<compile_context>
chip_gen: v7x
topology: tpu7x:2x2x1
jax: 0.10.0
libtpu: 0.0.40
codegen_flags: <defaults>
</compile_context>

<pallas_src>
import jax
import jax.numpy as jnp
from jax.experimental import pallas as pl
from jax.experimental.pallas import tpu as pltpu


def _disc_kernel(x_ref, n_ref, w1_ref, w1n_ref, b1_ref, w2_ref, b2_ref,
                 w3_ref, b3_ref, out_ref):
    """One batch tile of the 3-layer MLP discriminator.

    x_ref:   (TB, Dp)    f32   flattened image tile (cast to bf16 at the MXU)
    n_ref:   (TB, 1)     f32   num_nodes column
    w1_ref:  (Dp, 512)   bf16  image part of layer-1 weight (K lane-aligned)
    w1n_ref: (1, 512)    f32   num_nodes row of layer-1 weight
    b1_ref:  (1, 512)    f32
    w2_ref:  (512, 256)  bf16
    b2_ref:  (1, 256)    f32
    w3_ref:  (1, 256)    f32   layer-3 weight stored as a row (output width 1)
    b3_ref:  (1, 1)      f32
    out_ref: (TB, 1)     f32
    """
    # Layer 1: aligned-K MXU matmul (bf16 inputs, f32 accumulation).  The
    # num_nodes column is added on the VPU, so the concatenated (B, D+1)
    # tensor is never materialized and K stays a multiple of 128.
    h1 = jnp.dot(x_ref[...].astype(jnp.bfloat16), w1_ref[...],
                 preferred_element_type=jnp.float32)
    h1 = h1 + n_ref[...] * w1n_ref[...] + b1_ref[...]
    h1 = jnp.where(h1 > 0, h1, 0.2 * h1)                       # LeakyReLU(0.2), f32

    # Layer 2.
    h2 = jnp.dot(h1.astype(jnp.bfloat16), w2_ref[...],
                 preferred_element_type=jnp.float32)
    h2 = h2 + b2_ref[...]
    h2 = jnp.where(h2 > 0, h2, 0.2 * h2)                       # LeakyReLU(0.2), f32

    # Layer 3 (output width 1): VPU multiply + XLU lane reduction instead of
    # a 1-of-256-columns MXU pass.
    h3 = jnp.sum(h2 * w3_ref[...], axis=-1, keepdims=True) + b3_ref[...]
    out_ref[...] = jax.nn.sigmoid(h3)                          # EUP + VPU, f32


def discriminator_forward(img, num_nodes, params, *, batch_tile=512):
    """img: (B, C, H, W) f32, num_nodes: (B, 1) f32. Returns (B, 1) validity."""
    b = img.shape[0]
    img_flat = img.reshape(b, -1).astype(jnp.float32)           # reshape glue only
    d = img_flat.shape[1]

    w1_img, w1_node, b1, w2, b2, w3_row, b3 = params

    # Zero-pad K up to a multiple of 128 (no-op for the common aligned case);
    # padded columns multiply padded zero weight rows, so the result is exact.
    d_pad = ((d + 127) // 128) * 128
    if d_pad != d:
        img_flat = jnp.pad(img_flat, ((0, 0), (0, d_pad - d)))
        w1_img = jnp.pad(w1_img, ((0, d_pad - d), (0, 0)))

    # Sublane-friendly batch tile; pad the batch up to a multiple of it.
    tb = min(batch_tile, ((b + 7) // 8) * 8)
    padded_b = ((b + tb - 1) // tb) * tb
    if padded_b != b:
        img_flat = jnp.pad(img_flat, ((0, padded_b - b), (0, 0)))
        num_nodes = jnp.pad(num_nodes, ((0, padded_b - b), (0, 0)))
    num_nodes = num_nodes.astype(jnp.float32)

    grid = (padded_b // tb,)

    def row_spec(shape):      # tiled over the batch axis
        return pl.BlockSpec(shape, lambda i: (i, 0))

    def full_spec(shape):     # VMEM-resident across all batch tiles
        return pl.BlockSpec(shape, lambda i: (0, 0))

    out = pl.pallas_call(
        _disc_kernel,
        out_shape=jax.ShapeDtypeStruct((padded_b, 1), jnp.float32),
        grid=grid,
        in_specs=[
            row_spec((tb, d_pad)),        # x tile
            row_spec((tb, 1)),            # num_nodes tile
            full_spec((d_pad, 512)),      # w1_img (bf16)
            full_spec((1, 512)),          # w1_node
            full_spec((1, 512)),          # b1
            full_spec((512, 256)),        # w2 (bf16)
            full_spec((1, 256)),          # b2
            full_spec((1, 256)),          # w3 row
            full_spec((1, 1)),            # b3
        ],
        out_specs=row_spec((tb, 1)),
        compiler_params=pltpu.CompilerParams(
            dimension_semantics=("parallel",)),
    )(img_flat, num_nodes, w1_img, w1_node, b1, w2, b2, w3_row, b3)

    return out[:b]


def init_params(key, img_dim):
    """nn.Linear-style U(-1/sqrt(fan_in), 1/sqrt(fan_in)) init.

    Layer-1 weight is stored split (image part + num_nodes row); the fan_in
    of the original layer is img_dim + 1.  Layer-3 weight is stored as a
    (1, 256) row.  The two big matmul weights are kept in bf16.
    """
    keys = jax.random.split(key, 7)
    bnd1 = 1.0 / jnp.sqrt(img_dim + 1.0)
    bnd2 = 1.0 / jnp.sqrt(512.0)
    bnd3 = 1.0 / jnp.sqrt(256.0)
    w1_img = jax.random.uniform(keys[0], (img_dim, 512), jnp.float32,
                                -bnd1, bnd1).astype(jnp.bfloat16)
    w1_node = jax.random.uniform(keys[1], (1, 512), jnp.float32, -bnd1, bnd1)
    b1 = jax.random.uniform(keys[2], (1, 512), jnp.float32, -bnd1, bnd1)
    w2 = jax.random.uniform(keys[3], (512, 256), jnp.float32,
                            -bnd2, bnd2).astype(jnp.bfloat16)
    b2 = jax.random.uniform(keys[4], (1, 256), jnp.float32, -bnd2, bnd2)
    w3_row = jax.random.uniform(keys[5], (1, 256), jnp.float32, -bnd3, bnd3)
    b3 = jax.random.uniform(keys[6], (1, 1), jnp.float32, -bnd3, bnd3)
    return (w1_img, w1_node, b1, w2, b2, w3_row, b3)


def _reference_forward(img, num_nodes, params):
    """Pure-JAX f32 reference of the PyTorch forward (concat formulation)."""
    w1_img, w1_node, b1, w2, b2, w3_row, b3 = params
    x = jnp.concatenate([img.reshape(img.shape[0], -1), num_nodes], axis=1)
    w1 = jnp.concatenate([w1_img.astype(jnp.float32), w1_node], axis=0)
    h = x @ w1 + b1
    h = jnp.where(h > 0, h, 0.2 * h)
    h = h @ w2.astype(jnp.float32) + b2
    h = jnp.where(h > 0, h, 0.2 * h)
    h = h @ w3_row.T + b3
    return jax.nn.sigmoid(h)


if __name__ == "__main__":
    key = jax.random.PRNGKey(0)
    k_img, k_nodes, k_params = jax.random.split(key, 3)

    # Small, module-consistent shapes: img_shape = (4, 16, 16), batch = 2.
    B, C, H, W = 2, 4, 16, 16
    img = jax.random.normal(k_img, (B, C, H, W), jnp.float32)
    num_nodes = jax.random.uniform(k_nodes, (B, 1), jnp.float32, 0.0, 10.0)

    params = init_params(k_params, C * H * W)

    out = jax.block_until_ready(discriminator_forward(img, num_nodes, params))
    ref = _reference_forward(img, num_nodes, params)

    assert out.shape == (B, 1)
    # bf16 matmul inputs vs f32 reference -> loose-but-safe tolerance.
    assert jnp.allclose(out, ref, atol=2e-2, rtol=2e-2), (out, ref)

    print("KERNEL_OK")
</pallas_src>

<mosaic_0001>
module attributes {stable_mosaic.version = 11 : i64} {
  func.func @_disc_kernel(%arg0: i32, %arg1: memref<8x1024xf32, #tpu.memory_space<vmem>>, %arg2: memref<8x1xf32, #tpu.memory_space<vmem>>, %arg3: memref<1024x512xbf16, #tpu.memory_space<vmem>>, %arg4: memref<1x512xf32, #tpu.memory_space<vmem>>, %arg5: memref<1x512xf32, #tpu.memory_space<vmem>>, %arg6: memref<512x256xbf16, #tpu.memory_space<vmem>>, %arg7: memref<1x256xf32, #tpu.memory_space<vmem>>, %arg8: memref<1x256xf32, #tpu.memory_space<vmem>>, %arg9: memref<1x1xf32, #tpu.memory_space<vmem>>, %arg10: memref<8x1xf32, #tpu.memory_space<vmem>>) attributes {dimension_semantics = [#tpu.dimension_semantics<parallel>], iteration_bounds = array<i64: 1>, scalar_prefetch = 0 : i64, scratch_operands = 0 : i64, tpu.core_type = #tpu.core_type<tc>, window_params = [{transform_indices = @transform_0, window_bounds = array<i64: 8, 1024>}, {transform_indices = @transform_1, window_bounds = array<i64: 8, 1>}, {pipeline_mode = #tpu.pipeline_mode<synchronous>, transform_indices = @transform_2, window_bounds = array<i64: 1024, 512>}, {pipeline_mode = #tpu.pipeline_mode<synchronous>, transform_indices = @transform_3, window_bounds = array<i64: 1, 512>}, {pipeline_mode = #tpu.pipeline_mode<synchronous>, transform_indices = @transform_4, window_bounds = array<i64: 1, 512>}, {pipeline_mode = #tpu.pipeline_mode<synchronous>, transform_indices = @transform_5, window_bounds = array<i64: 512, 256>}, {pipeline_mode = #tpu.pipeline_mode<synchronous>, transform_indices = @transform_6, window_bounds = array<i64: 1, 256>}, {pipeline_mode = #tpu.pipeline_mode<synchronous>, transform_indices = @transform_7, window_bounds = array<i64: 1, 256>}, {pipeline_mode = #tpu.pipeline_mode<synchronous>, transform_indices = @transform_8, window_bounds = array<i64: 1, 1>}, {transform_indices = @transform_9, window_bounds = array<i64: 8, 1>}]} {
    %c0 = arith.constant 0 : index
    %c0_0 = arith.constant 0 : index
    %0 = vector.load %arg1[%c0, %c0_0] : memref<8x1024xf32, #tpu.memory_space<vmem>>, vector<8x1024xf32>
    %1 = arith.truncf %0 : vector<8x1024xf32> to vector<8x1024xbf16>
    %c0_1 = arith.constant 0 : index
    %c0_2 = arith.constant 0 : index
    %2 = vector.load %arg3[%c0_1, %c0_2] : memref<1024x512xbf16, #tpu.memory_space<vmem>>, vector<1024x512xbf16>
    %cst = arith.constant dense<0.000000e+00> : vector<8x512xf32>
    %3 = tpu.matmul %1, %2, %cst {dimension_numbers = #tpu.dot_dimension_numbers<[1], [0], [0], [1], [0, 0, 1, 1], [], []>} : vector<8x1024xbf16>, vector<1024x512xbf16>, vector<8x512xf32> -> vector<8x512xf32>
    %c0_3 = arith.constant 0 : index
    %c0_4 = arith.constant 0 : index
    %4 = vector.load %arg2[%c0_3, %c0_4] : memref<8x1xf32, #tpu.memory_space<vmem>>, vector<8x1xf32>
    %c0_5 = arith.constant 0 : index
    %c0_6 = arith.constant 0 : index
    %5 = vector.load %arg4[%c0_5, %c0_6] : memref<1x512xf32, #tpu.memory_space<vmem>>, vector<1x512xf32>
    %6 = vector.broadcast %4 : vector<8x1xf32> to vector<8x512xf32>
    %7 = vector.broadcast %5 : vector<1x512xf32> to vector<8x512xf32>
    %8 = arith.mulf %6, %7 : vector<8x512xf32>
    %9 = arith.addf %3, %8 : vector<8x512xf32>
    %c0_7 = arith.constant 0 : index
    %c0_8 = arith.constant 0 : index
    %10 = vector.load %arg5[%c0_7, %c0_8] : memref<1x512xf32, #tpu.memory_space<vmem>>, vector<1x512xf32>
    %11 = vector.broadcast %10 : vector<1x512xf32> to vector<8x512xf32>
    %12 = arith.addf %9, %11 : vector<8x512xf32>
    %cst_9 = arith.constant 0.000000e+00 : f32
    %13 = vector.broadcast %cst_9 : f32 to vector<8x512xf32>
    %14 = arith.cmpf ogt, %12, %13 : vector<8x512xf32>
    %cst_10 = arith.constant 2.000000e-01 : f32
    %15 = vector.broadcast %cst_10 : f32 to vector<8x512xf32>
    %16 = arith.mulf %15, %12 : vector<8x512xf32>
    %17 = arith.select %14, %12, %16 : vector<8x512xi1>, vector<8x512xf32>
    %18 = arith.truncf %17 : vector<8x512xf32> to vector<8x512xbf16>
    %c0_11 = arith.constant 0 : index
    %c0_12 = arith.constant 0 : index
    %19 = vector.load %arg6[%c0_11, %c0_12] : memref<512x256xbf16, #tpu.memory_space<vmem>>, vector<512x256xbf16>
    %cst_13 = arith.constant dense<0.000000e+00> : vector<8x256xf32>
    %20 = tpu.matmul %18, %19, %cst_13 {dimension_numbers = #tpu.dot_dimension_numbers<[1], [0], [0], [1], [0, 0, 1, 1], [], []>} : vector<8x512xbf16>, vector<512x256xbf16>, vector<8x256xf32> -> vector<8x256xf32>
    %c0_14 = arith.constant 0 : index
    %c0_15 = arith.constant 0 : index
    %21 = vector.load %arg7[%c0_14, %c0_15] : memref<1x256xf32, #tpu.memory_space<vmem>>, vector<1x256xf32>
    %22 = vector.broadcast %21 : vector<1x256xf32> to vector<8x256xf32>
    %23 = arith.addf %20, %22 : vector<8x256xf32>
    %cst_16 = arith.constant 0.000000e+00 : f32
    %24 = vector.broadcast %cst_16 : f32 to vector<8x256xf32>
    %25 = arith.cmpf ogt, %23, %24 : vector<8x256xf32>
    %cst_17 = arith.constant 2.000000e-01 : f32
    %26 = vector.broadcast %cst_17 : f32 to vector<8x256xf32>
    %27 = arith.mulf %26, %23 : vector<8x256xf32>
    %28 = arith.select %25, %23, %27 : vector<8x256xi1>, vector<8x256xf32>
    %c0_18 = arith.constant 0 : index
    %c0_19 = arith.constant 0 : index
    %29 = vector.load %arg8[%c0_18, %c0_19] : memref<1x256xf32, #tpu.memory_space<vmem>>, vector<1x256xf32>
    %30 = vector.broadcast %29 : vector<1x256xf32> to vector<8x256xf32>
    %31 = arith.mulf %28, %30 : vector<8x256xf32>
    %cst_20 = arith.constant dense<0.000000e+00> : vector<8xf32>
    %32 = vector.multi_reduction <add>, %31, %cst_20 [1] : vector<8x256xf32> to vector<8xf32>
    %33 = vector.shape_cast %32 : vector<8xf32> to vector<8x1xf32>
    %c0_21 = arith.constant 0 : index
    %c0_22 = arith.constant 0 : index
    %34 = vector.load %arg9[%c0_21, %c0_22] : memref<1x1xf32, #tpu.memory_space<vmem>>, vector<1x1xf32>
    %35 = vector.broadcast %34 : vector<1x1xf32> to vector<8x1xf32>
    %36 = arith.addf %33, %35 : vector<8x1xf32>
    %37 = arith.negf %36 : vector<8x1xf32>
    %38 = math.exp %37 : vector<8x1xf32>
    %cst_23 = arith.constant 1.000000e+00 : f32
    %39 = vector.broadcast %cst_23 : f32 to vector<8x1xf32>
    %40 = arith.addf %39, %38 : vector<8x1xf32>
    %41 = arith.divf %39, %40 : vector<8x1xf32>
    %c0_24 = arith.constant 0 : index
    %c0_25 = arith.constant 0 : index
    %42 = vector.load %arg10[%c0_24, %c0_25] : memref<8x1xf32, #tpu.memory_space<vmem>>, vector<8x1xf32>
    tpu.vector_store %arg10[%c0_24, %c0_25], %41 {strides = array<i32>} : memref<8x1xf32, #tpu.memory_space<vmem>>, vector<8x1xf32>,
    return
  }
  func.func @transform_0(%arg0: i32) -> (i32, i32) {
    %c0_i32 = arith.constant 0 : i32
    %c0_i32_0 = arith.constant 0 : i32
    return %arg0, %c0_i32 : i32, i32
  }
  func.func @transform_1(%arg0: i32) -> (i32, i32) {
    %c0_i32 = arith.constant 0 : i32
    %c0_i32_0 = arith.constant 0 : i32
    return %arg0, %c0_i32 : i32, i32
  }
  func.func @transform_2(%arg0: i32) -> (i32, i32) {
    %c0_i32 = arith.constant 0 : i32
    %c0_i32_0 = arith.constant 0 : i32
    %c0_i32_1 = arith.constant 0 : i32
    return %c0_i32, %c0_i32_0 : i32, i32
  }
  func.func @transform_3(%arg0: i32) -> (i32, i32) {
    %c0_i32 = arith.constant 0 : i32
    %c0_i32_0 = arith.constant 0 : i32
    %c0_i32_1 = arith.constant 0 : i32
    return %c0_i32, %c0_i32_0 : i32, i32
  }
  func.func @transform_4(%arg0: i32) -> (i32, i32) {
    %c0_i32 = arith.constant 0 : i32
    %c0_i32_0 = arith.constant 0 : i32
    %c0_i32_1 = arith.constant 0 : i32
    return %c0_i32, %c0_i32_0 : i32, i32
  }
  func.func @transform_5(%arg0: i32) -> (i32, i32) {
    %c0_i32 = arith.constant 0 : i32
    %c0_i32_0 = arith.constant 0 : i32
    %c0_i32_1 = arith.constant 0 : i32
    return %c0_i32, %c0_i32_0 : i32, i32
  }
  func.func @transform_6(%arg0: i32) -> (i32, i32) {
    %c0_i32 = arith.constant 0 : i32
    %c0_i32_0 = arith.constant 0 : i32
    %c0_i32_1 = arith.constant 0 : i32
    return %c0_i32, %c0_i32_0 : i32, i32
  }
  func.func @transform_7(%arg0: i32) -> (i32, i32) {
    %c0_i32 = arith.constant 0 : i32
    %c0_i32_0 = arith.constant 0 : i32
    %c0_i32_1 = arith.constant 0 : i32
    return %c0_i32, %c0_i32_0 : i32, i32
  }
  func.func @transform_8(%arg0: i32) -> (i32, i32) {
    %c0_i32 = arith.constant 0 : i32
    %c0_i32_0 = arith.constant 0 : i32
    %c0_i32_1 = arith.constant 0 : i32
    return %c0_i32, %c0_i32_0 : i32, i32
  }
  func.func @transform_9(%arg0: i32) -> (i32, i32) {
    %c0_i32 = arith.constant 0 : i32
    %c0_i32_0 = arith.constant 0 : i32
    return %arg0, %c0_i32 : i32, i32
  }
}

</mosaic_0001>

<llo_original>
// kernel: tpu_custom_call.1
$region0: #{tpu_custom_call.1}
  #allocation0 [shape = 'u32[]', space=smem, size = 0x4, offset = 0x4, fixed_abs, tag = 'smem constant byte address 0x4 - core index']
  #allocation1 [shape = 'u32[144,128]{1,0:T(1,128)}', space=vmem, size = 0x12000, scoped, tag = 'internal scratch']
  #allocation2 [shape = 'f32[1,1]{1,0:T(1,128)S(1)}', space=vmem, size = 0x200, scoped, tag = 'scoped memory for tpu_custom_call.1']
  %s0 = inlined_call_operand.hbm [shape: f32[8,1024], index: 0, kind: input, shape index: {}]
  %s1 = inlined_call_operand.vmem [shape: f32[8,1], index: 1, kind: input, shape index: {}]
  %s2 = inlined_call_operand.hbm [shape: bf16[1024,512], index: 2, kind: input, shape index: {}]
  %s3 = inlined_call_operand.vmem [shape: f32[1,512], index: 3, kind: input, shape index: {}]
  %s4 = inlined_call_operand.vmem [shape: f32[1,512], index: 4, kind: input, shape index: {}]
  %s5 = inlined_call_operand.hbm [shape: bf16[512,256], index: 5, kind: input, shape index: {}]
  %s6 = inlined_call_operand.vmem [shape: f32[1,256], index: 6, kind: input, shape index: {}]
  %s7 = inlined_call_operand.vmem [shape: f32[1,256], index: 7, kind: input, shape index: {}]
  %s8 = inlined_call_operand.<no memory space> [shape: f32[1,1], index: 8, kind: input, shape index: {}]
  %s9 = inlined_call_operand.vmem [shape: f32[8,1], index: 9, kind: output, shape index: {}]
  %s10 = sld [smem:[#allocation0]]
  $region58: #{tpu_custom_call.1} parent=0
    _
  %s12 = ssub.s32 1, %s10
  %s13 = scalar_select 0, %s12, %s10
  %v14 = vstv %s8
  %15 = vst [vmem:[#allocation2] sm:$0x1] %v14
  $region1: #{tpu_custom_call.1} parent=0
    #allocation3 [shape = 'u8[32768]{0}', space=vmem, size = 0x8000, scoped, tag = 'input window, operand 0, single buffered']
    #allocation4 [shape = 's32[1]{0}', space=sflag, size = 0x4, scoped, tag = 'scoped memory for tpu_custom_call.1']
    #allocation5 [shape = 'u8[1048576]{0}', space=vmem, size = 0x100000, scoped, tag = 'input window, operand 2, single buffered']
    #allocation6 [shape = 's32[1]{0}', space=sflag, size = 0x4, scoped, tag = 'scoped memory for tpu_custom_call.1']
    #allocation7 [shape = 'u8[262144]{0}', space=vmem, size = 0x40000, scoped, tag = 'input window, operand 5, single buffered']
    %16 = vsyncpa [#allocation4], 0
    %17 = vsyncpa [#allocation6], 0
    // Predicated region
    $region2: #{tpu_custom_call.1} parent=1 // pred_check
      _
    $region3: #{tpu_custom_call.1} parent=1 // pred_check_branch
      %19 = sbr.rel (0) target = $region5
    $region4: #{tpu_custom_call.1} parent=1 // pred_region
      %s21 = ssub.s32 1024, 1024
      %22 = vsyncadd [#allocation4], %s21
      %s24 = sshll.u32 [#allocation3], 4
      %s25 = int_to_ptr.vmem [resolvable:$true] %s24
      %27 = dma.hbm_to_vmem [thread:$0]  %s0, 1024, %s25, [#allocation4]
    $region5: #{tpu_custom_call.1} parent=1 // pred_fallthru
      _
    // Predicated region
    $region6: #{tpu_custom_call.1} parent=1 // pred_check
      _
    $region7: #{tpu_custom_call.1} parent=1 // pred_check_branch
      %29 = sbr.rel (0) target = $region9
    $region8: #{tpu_custom_call.1} parent=1 // pred_region
      _
    $region9: #{tpu_custom_call.1} parent=1 // pred_fallthru
      _
    // Predicated region
    $region10: #{tpu_custom_call.1} parent=1 // pred_check
      _
    $region11: #{tpu_custom_call.1} parent=1 // pred_check_branch
      %31 = sbr.rel (0) target = $region13
    $region12: #{tpu_custom_call.1} parent=1 // pred_region
      %s33 = ssub.s32 32768, 32768
      %34 = vsyncadd [#allocation6], %s33
      %s35 = sshll.u32 [#allocation5], 4
      %s36 = int_to_ptr.vmem [resolvable:$true] %s35
      %41 = dma.hbm_to_vmem [thread:$0]  %s2, 32768, %s36, [#allocation6], 256, 256, 16
    $region13: #{tpu_custom_call.1} parent=1 // pred_fallthru
      _
    // Predicated region
    $region14: #{tpu_custom_call.1} parent=1 // pred_check
      _
    $region15: #{tpu_custom_call.1} parent=1 // pred_check_branch
      %43 = sbr.rel (0) target = $region17
    $region16: #{tpu_custom_call.1} parent=1 // pred_region
      _
    $region17: #{tpu_custom_call.1} parent=1 // pred_fallthru
      _
    // Predicated region
    $region18: #{tpu_custom_call.1} parent=1 // pred_check
      _
    $region19: #{tpu_custom_call.1} parent=1 // pred_check_branch
      %45 = sbr.rel (0) target = $region21
    $region20: #{tpu_custom_call.1} parent=1 // pred_region
      _
    $region21: #{tpu_custom_call.1} parent=1 // pred_fallthru
      _
    // Predicated region
    $region22: #{tpu_custom_call.1} parent=1 // pred_check
      _
    $region23: #{tpu_custom_call.1} parent=1 // pred_check_branch
      %47 = sbr.rel (0) target = $region25
    $region24: #{tpu_custom_call.1} parent=1 // pred_region
      %s49 = ssub.s32 8192, 8192
      %50 = vsyncadd [#allocation6], %s49
      %s51 = sshll.u32 [#allocation7], 4
      %s52 = int_to_ptr.vmem [resolvable:$true] %s51
      %57 = dma.hbm_to_vmem [thread:$0]  %s5, 8192, %s52, [#allocation6], 128, 128, 8
    $region25: #{tpu_custom_call.1} parent=1 // pred_fallthru
      _
    // Predicated region
    $region26: #{tpu_custom_call.1} parent=1 // pred_check
      _
    $region27: #{tpu_custom_call.1} parent=1 // pred_check_branch
      %59 = sbr.rel (0) target = $region29
    $region28: #{tpu_custom_call.1} parent=1 // pred_region
      _
    $region29: #{tpu_custom_call.1} parent=1 // pred_fallthru
      _
    // Predicated region
    $region30: #{tpu_custom_call.1} parent=1 // pred_check
      _
    $region31: #{tpu_custom_call.1} parent=1 // pred_check_branch
      %61 = sbr.rel (0) target = $region33
    $region32: #{tpu_custom_call.1} parent=1 // pred_region
      _
    $region33: #{tpu_custom_call.1} parent=1 // pred_fallthru
      _
    // Predicated region
    $region34: #{tpu_custom_call.1} parent=1 // pred_check
      _
    $region35: #{tpu_custom_call.1} parent=1 // pred_check_branch
      %63 = sbr.rel (0) target = $region37
    $region36: #{tpu_custom_call.1} parent=1 // pred_region
      _
    $region37: #{tpu_custom_call.1} parent=1 // pred_fallthru
      _
    // Predicated region
    $region38: #{tpu_custom_call.1} parent=1 // pred_check
      _
    $region39: #{tpu_custom_call.1} parent=1 // pred_check_branch
      %65 = sbr.rel (0) target = $region41
    $region40: #{tpu_custom_call.1} parent=1 // pred_region
      %66 = dma.done [#allocation4], 1024
    $region41: #{tpu_custom_call.1} parent=1 // pred_fallthru
      _
    // Predicated region
    $region42: #{tpu_custom_call.1} parent=1 // pred_check
      _
    $region43: #{tpu_custom_call.1} parent=1 // pred_check_branch
      %68 = sbr.rel (0) target = $region45
    $region44: #{tpu_custom_call.1} parent=1 // pred_region
      %69 = dma.done [#allocation6], 32768
    $region45: #{tpu_custom_call.1} parent=1 // pred_fallthru
      _
    // Predicated region
    $region46: #{tpu_custom_call.1} parent=1 // pred_check
      _
    $region47: #{tpu_custom_call.1} parent=1 // pred_check_branch
      %71 = sbr.rel (0) target = $region49
    $region48: #{tpu_custom_call.1} parent=1 // pred_region
      %72 = dma.done [#allocation6], 8192
    $region49: #{tpu_custom_call.1} parent=1 // pred_fallthru
      _
    %v73 = vld [vmem:[#allocation3] sm:$0xff]
    %v74 = vld [vmem:[#allocation3 + $0x8] sm:$0xff]
    %v75 = vld [vmem:[#allocation3 + $0x10] sm:$0xff]
    %v76 = vld [vmem:[#allocation3 + $0x18] sm:$0xff]
    %v77 = vld [vmem:[#allocation3 + $0x20] sm:$0xff]
    %v78 = vld [vmem:[#allocation3 + $0x28] sm:$0xff]
    %v79 = vld [vmem:[#allocation3 + $0x30] sm:$0xff]
    %v80 = vld [vmem:[#allocation3 + $0x38] sm:$0xff]
    %v81 = vpack.c.bf16 %v73, %v73
    %v82 = vpack.c.bf16 %v74, %v74
    %v83 = vpack.c.bf16 %v75, %v75
    %v84 = vpack.c.bf16 %v76, %v76
    %v85 = vpack.c.bf16 %v77, %v77
    %v86 = vpack.c.bf16 %v78, %v78
    %v87 = vpack.c.bf16 %v79, %v79
    %v88 = vpack.c.bf16 %v80, %v80
    %v89 = vld [vmem:[#allocation5] sm:$0xff]
    %v90 = vld [vmem:[#allocation5 + $0x8] sm:$0xff]
    %v91 = vld [vmem:[#allocation5 + $0x10] sm:$0xff]
    %v92 = vld [vmem:[#allocation5 + $0x18] sm:$0xff]
    %v93 = vld [vmem:[#allocation5 + $0x20] sm:$0xff]
    %v94 = vld [vmem:[#allocation5 + $0x28] sm:$0xff]
    %v95 = vld [vmem:[#allocation5 + $0x30] sm:$0xff]
    %v96 = vld [vmem:[#allocation5 + $0x38] sm:$0xff]
    %v97 = vld [vmem:[#allocation5 + $0x40] sm:$0xff]
    %v98 = vld [vmem:[#allocation5 + $0x48] sm:$0xff]
    %v99 = vld [vmem:[#allocation5 + $0x50] sm:$0xff]
    %v100 = vld [vmem:[#allocation5 + $0x58] sm:$0xff]
    %v101 = vld [vmem:[#allocation5 + $0x60] sm:$0xff]
    %v102 = vld [vmem:[#allocation5 + $0x68] sm:$0xff]
    %v103 = vld [vmem:[#allocation5 + $0x70] sm:$0xff]
    %v104 = vld [vmem:[#allocation5 + $0x78] sm:$0xff]
    %v105 = vld [vmem:[#allocation5 + $0x80] sm:$0xff]
    %v106 = vld [vmem:[#allocation5 + $0x88] sm:$0xff]
    %v107 = vld [vmem:[#allocation5 + $0x90] sm:$0xff]
    %v108 = vld [vmem:[#allocation5 + $0x98] sm:$0xff]
    %v109 = vld [vmem:[#allocation5 + $0xa0] sm:$0xff]
    %v110 = vld [vmem:[#allocation5 + $0xa8] sm:$0xff]
    %v111 = vld [vmem:[#allocation5 + $0xb0] sm:$0xff]
    %v112 = vld [vmem:[#allocation5 + $0xb8] sm:$0xff]
    %v113 = vld [vmem:[#allocation5 + $0xc0] sm:$0xff]
    %v114 = vld [vmem:[#allocation5 + $0xc8] sm:$0xff]
    %v115 = vld [vmem:[#allocation5 + $0xd0] sm:$0xff]
    %v116 = vld [vmem:[#allocation5 + $0xd8] sm:$0xff]
    %v117 = vld [vmem:[#allocation5 + $0xe0] sm:$0xff]
    %v118 = vld [vmem:[#allocation5 + $0xe8] sm:$0xff]
    %v119 = vld [vmem:[#allocation5 + $0xf0] sm:$0xff]
    %v120 = vld [vmem:[#allocation5 + $0xf8] sm:$0xff]
    %v121 = vld [vmem:[#allocation5 + $0x100] sm:$0xff]
    %v122 = vld [vmem:[#allocation5 + $0x108] sm:$0xff]
    %v123 = vld [vmem:[#allocation5 + $0x110] sm:$0xff]
    %v124 = vld [vmem:[#allocation5 + $0x118] sm:$0xff]
    %v125 = vld [vmem:[#allocation5 + $0x120] sm:$0xff]
    %v126 = vld [vmem:[#allocation5 + $0x128] sm:$0xff]
    %v127 = vld [vmem:[#allocation5 + $0x130] sm:$0xff]
    %v128 = vld [vmem:[#allocation5 + $0x138] sm:$0xff]
    %v129 = vld [vmem:[#allocation5 + $0x140] sm:$0xff]
    %v130 = vld [vmem:[#allocation5 + $0x148] sm:$0xff]
    %v131 = vld [vmem:[#allocation5 + $0x150] sm:$0xff]
    %v132 = vld [vmem:[#allocation5 + $0x158] sm:$0xff]
    %v133 = vld [vmem:[#allocation5 + $0x160] sm:$0xff]
    %v134 = vld [vmem:[#allocation5 + $0x168] sm:$0xff]
    %v135 = vld [vmem:[#allocation5 + $0x170] sm:$0xff]
    %v136 = vld [vmem:[#allocation5 + $0x178] sm:$0xff]
    %v137 = vld [vmem:[#allocation5 + $0x180] sm:$0xff]
    %v138 = vld [vmem:[#allocation5 + $0x188] sm:$0xff]
    %v139 = vld [vmem:[#allocation5 + $0x190] sm:$0xff]
    %v140 = vld [vmem:[#allocation5 + $0x198] sm:$0xff]
    %v141 = vld [vmem:[#allocation5 + $0x1a0] sm:$0xff]
    %v142 = vld [vmem:[#allocation5 + $0x1a8] sm:$0xff]
    %v143 = vld [vmem:[#allocation5 + $0x1b0] sm:$0xff]
    %v144 = vld [vmem:[#allocation5 + $0x1b8] sm:$0xff]
    %v145 = vld [vmem:[#allocation5 + $0x1c0] sm:$0xff]
    %v146 = vld [vmem:[#allocation5 + $0x1c8] sm:$0xff]
    %v147 = vld [vmem:[#allocation5 + $0x1d0] sm:$0xff]
    %v148 = vld [vmem:[#allocation5 + $0x1d8] sm:$0xff]
    %v149 = vld [vmem:[#allocation5 + $0x1e0] sm:$0xff]
    %v150 = vld [vmem:[#allocation5 + $0x1e8] sm:$0xff]
    %v151 = vld [vmem:[#allocation5 + $0x1f0] sm:$0xff]
    %v152 = vld [vmem:[#allocation5 + $0x1f8] sm:$0xff]
    %v153 = vld [vmem:[#allocation5 + $0x200] sm:$0xff]
    %v154 = vld [vmem:[#allocation5 + $0x208] sm:$0xff]
    %v155 = vld [vmem:[#allocation5 + $0x210] sm:$0xff]
    %v156 = vld [vmem:[#allocation5 + $0x218] sm:$0xff]
    %v157 = vld [vmem:[#allocation5 + $0x220] sm:$0xff]
    %v158 = vld [vmem:[#allocation5 + $0x228] sm:$0xff]
    %v159 = vld [vmem:[#allocation5 + $0x230] sm:$0xff]
    %v160 = vld [vmem:[#allocation5 + $0x238] sm:$0xff]
    %v161 = vld [vmem:[#allocation5 + $0x240] sm:$0xff]
    %v162 = vld [vmem:[#allocation5 + $0x248] sm:$0xff]
    %v163 = vld [vmem:[#allocation5 + $0x250] sm:$0xff]
    %v164 = vld [vmem:[#allocation5 + $0x258] sm:$0xff]
    %v165 = vld [vmem:[#allocation5 + $0x260] sm:$0xff]
    %v166 = vld [vmem:[#allocation5 + $0x268] sm:$0xff]
    %v167 = vld [vmem:[#allocation5 + $0x270] sm:$0xff]
    %v168 = vld [vmem:[#allocation5 + $0x278] sm:$0xff]
    %v169 = vld [vmem:[#allocation5 + $0x280] sm:$0xff]
    %v170 = vld [vmem:[#allocation5 + $0x288] sm:$0xff]
    %v171 = vld [vmem:[#allocation5 + $0x290] sm:$0xff]
    %v172 = vld [vmem:[#allocation5 + $0x298] sm:$0xff]
    %v173 = vld [vmem:[#allocation5 + $0x2a0] sm:$0xff]
    %v174 = vld [vmem:[#allocation5 + $0x2a8] sm:$0xff]
    %v175 = vld [vmem:[#allocation5 + $0x2b0] sm:$0xff]
    %v176 = vld [vmem:[#allocation5 + $0x2b8] sm:$0xff]
    %v177 = vld [vmem:[#allocation5 + $0x2c0] sm:$0xff]
    %v178 = vld [vmem:[#allocation5 + $0x2c8] sm:$0xff]
    %v179 = vld [vmem:[#allocation5 + $0x2d0] sm:$0xff]
    %v180 = vld [vmem:[#allocation5 + $0x2d8] sm:$0xff]
    %v181 = vld [vmem:[#allocation5 + $0x2e0] sm:$0xff]
    %v182 = vld [vmem:[#allocation5 + $0x2e8] sm:$0xff]
    %v183 = vld [vmem:[#allocation5 + $0x2f0] sm:$0xff]
    %v184 = vld [vmem:[#allocation5 + $0x2f8] sm:$0xff]
    %v185 = vld [vmem:[#allocation5 + $0x300] sm:$0xff]
    %v186 = vld [vmem:[#allocation5 + $0x308] sm:$0xff]
    %v187 = vld [vmem:[#allocation5 + $0x310] sm:$0xff]
    %v188 = vld [vmem:[#allocation5 + $0x318] sm:$0xff]
    %v189 = vld [vmem:[#allocation5 + $0x320] sm:$0xff]
    %v190 = vld [vmem:[#allocation5 + $0x328] sm:$0xff]
    %v191 = vld [vmem:[#allocation5 + $0x330] sm:$0xff]
    %v192 = vld [vmem:[#allocation5 + $0x338] sm:$0xff]
    %v193 = vld [vmem:[#allocation5 + $0x340] sm:$0xff]
    %v194 = vld [vmem:[#allocation5 + $0x348] sm:$0xff]
    %v195 = vld [vmem:[#allocation5 + $0x350] sm:$0xff]
    %v196 = vld [vmem:[#allocation5 + $0x358] sm:$0xff]
    %v197 = vld [vmem:[#allocation5 + $0x360] sm:$0xff]
    %v198 = vld [vmem:[#allocation5 + $0x368] sm:$0xff]
    %v199 = vld [vmem:[#allocation5 + $0x370] sm:$0xff]
    %v200 = vld [vmem:[#allocation5 + $0x378] sm:$0xff]
    %v201 = vld [vmem:[#allocation5 + $0x380] sm:$0xff]
    %v202 = vld [vmem:[#allocation5 + $0x388] sm:$0xff]
    %v203 = vld [vmem:[#allocation5 + $0x390] sm:$0xff]
    %v204 = vld [vmem:[#allocation5 + $0x398] sm:$0xff]
    %v205 = vld [vmem:[#allocation5 + $0x3a0] sm:$0xff]
    %v206 = vld [vmem:[#allocation5 + $0x3a8] sm:$0xff]
    %v207 = vld [vmem:[#allocation5 + $0x3b0] sm:$0xff]
    %v208 = vld [vmem:[#allocation5 + $0x3b8] sm:$0xff]
    %v209 = vld [vmem:[#allocation5 + $0x3c0] sm:$0xff]
    %v210 = vld [vmem:[#allocation5 + $0x3c8] sm:$0xff]
    %v211 = vld [vmem:[#allocation5 + $0x3d0] sm:$0xff]
    %v212 = vld [vmem:[#allocation5 + $0x3d8] sm:$0xff]
    %v213 = vld [vmem:[#allocation5 + $0x3e0] sm:$0xff]
    %v214 = vld [vmem:[#allocation5 + $0x3e8] sm:$0xff]
    %v215 = vld [vmem:[#allocation5 + $0x3f0] sm:$0xff]
    %v216 = vld [vmem:[#allocation5 + $0x3f8] sm:$0xff]
    %v217 = vld [vmem:[#allocation5 + $0x400] sm:$0xff]
    %v218 = vld [vmem:[#allocation5 + $0x408] sm:$0xff]
    %v219 = vld [vmem:[#allocation5 + $0x410] sm:$0xff]
    %v220 = vld [vmem:[#allocation5 + $0x418] sm:$0xff]
    %v221 = vld [vmem:[#allocation5 + $0x420] sm:$0xff]
    %v222 = vld [vmem:[#allocation5 + $0x428] sm:$0xff]
    %v223 = vld [vmem:[#allocation5 + $0x430] sm:$0xff]
    %v224 = vld [vmem:[#allocation5 + $0x438] sm:$0xff]
    %v225 = vld [vmem:[#allocation5 + $0x440] sm:$0xff]
    %v226 = vld [vmem:[#allocation5 + $0x448] sm:$0xff]
    %v227 = vld [vmem:[#allocation5 + $0x450] sm:$0xff]
    %v228 = vld [vmem:[#allocation5 + $0x458] sm:$0xff]
    %v229 = vld [vmem:[#allocation5 + $0x460] sm:$0xff]
    %v230 = vld [vmem:[#allocation5 + $0x468] sm:$0xff]
    %v231 = vld [vmem:[#allocation5 + $0x470] sm:$0xff]
    %v232 = vld [vmem:[#allocation5 + $0x478] sm:$0xff]
    %v233 = vld [vmem:[#allocation5 + $0x480] sm:$0xff]
    %v234 = vld [vmem:[#allocation5 + $0x488] sm:$0xff]
    %v235 = vld [vmem:[#allocation5 + $0x490] sm:$0xff]
    %v236 = vld [vmem:[#allocation5 + $0x498] sm:$0xff]
    %v237 = vld [vmem:[#allocation5 + $0x4a0] sm:$0xff]
    %v238 = vld [vmem:[#allocation5 + $0x4a8] sm:$0xff]
    %v239 = vld [vmem:[#allocation5 + $0x4b0] sm:$0xff]
    %v240 = vld [vmem:[#allocation5 + $0x4b8] sm:$0xff]
    %v241 = vld [vmem:[#allocation5 + $0x4c0] sm:$0xff]
    %v242 = vld [vmem:[#allocation5 + $0x4c8] sm:$0xff]
    %v243 = vld [vmem:[#allocation5 + $0x4d0] sm:$0xff]
    %v244 = vld [vmem:[#allocation5 + $0x4d8] sm:$0xff]
    %v245 = vld [vmem:[#allocation5 + $0x4e0] sm:$0xff]
    %v246 = vld [vmem:[#allocation5 + $0x4e8] sm:$0xff]
    %v247 = vld [vmem:[#allocation5 + $0x4f0] sm:$0xff]
    %v248 = vld [vmem:[#allocation5 + $0x4f8] sm:$0xff]
    %v249 = vld [vmem:[#allocation5 + $0x500] sm:$0xff]
    %v250 = vld [vmem:[#allocation5 + $0x508] sm:$0xff]
    %v251 = vld [vmem:[#allocation5 + $0x510] sm:$0xff]
    %v252 = vld [vmem:[#allocation5 + $0x518] sm:$0xff]
    %v253 = vld [vmem:[#allocation5 + $0x520] sm:$0xff]
    %v254 = vld [vmem:[#allocation5 + $0x528] sm:$0xff]
    %v255 = vld [vmem:[#allocation5 + $0x530] sm:$0xff]
    %v256 = vld [vmem:[#allocation5 + $0x538] sm:$0xff]
    %v257 = vld [vmem:[#allocation5 + $0x540] sm:$0xff]
    %v258 = vld [vmem:[#allocation5 + $0x548] sm:$0xff]
    %v259 = vld [vmem:[#allocation5 + $0x550] sm:$0xff]
    %v260 = vld [vmem:[#allocation5 + $0x558] sm:$0xff]
    %v261 = vld [vmem:[#allocation5 + $0x560] sm:$0xff]
    %v262 = vld [vmem:[#allocation5 + $0x568] sm:$0xff]
    %v263 = vld [vmem:[#allocation5 + $0x570] sm:$0xff]
    %v264 = vld [vmem:[#allocation5 + $0x578] sm:$0xff]
    %v265 = vld [vmem:[#allocation5 + $0x580] sm:$0xff]
    %v266 = vld [vmem:[#allocation5 + $0x588] sm:$0xff]
    %v267 = vld [vmem:[#allocation5 + $0x590] sm:$0xff]
    %v268 = vld [vmem:[#allocation5 + $0x598] sm:$0xff]
    %v269 = vld [vmem:[#allocation5 + $0x5a0] sm:$0xff]
    %v270 = vld [vmem:[#allocation5 + $0x5a8] sm:$0xff]
    %v271 = vld [vmem:[#allocation5 + $0x5b0] sm:$0xff]
    %v272 = vld [vmem:[#allocation5 + $0x5b8] sm:$0xff]
    %v273 = vld [vmem:[#allocation5 + $0x5c0] sm:$0xff]
    %v274 = vld [vmem:[#allocation5 + $0x5c8] sm:$0xff]
    %v275 = vld [vmem:[#allocation5 + $0x5d0] sm:$0xff]
    %v276 = vld [vmem:[#allocation5 + $0x5d8] sm:$0xff]
    %v277 = vld [vmem:[#allocation5 + $0x5e0] sm:$0xff]
    %v278 = vld [vmem:[#allocation5 + $0x5e8] sm:$0xff]
    %v279 = vld [vmem:[#allocation5 + $0x5f0] sm:$0xff]
    %v280 = vld [vmem:[#allocation5 + $0x5f8] sm:$0xff]
    %v281 = vld [vmem:[#allocation5 + $0x600] sm:$0xff]
    %v282 = vld [vmem:[#allocation5 + $0x608] sm:$0xff]
    %v283 = vld [vmem:[#allocation5 + $0x610] sm:$0xff]
    %v284 = vld [vmem:[#allocation5 + $0x618] sm:$0xff]
    %v285 = vld [vmem:[#allocation5 + $0x620] sm:$0xff]
    %v286 = vld [vmem:[#allocation5 + $0x628] sm:$0xff]
    %v287 = vld [vmem:[#allocation5 + $0x630] sm:$0xff]
    %v288 = vld [vmem:[#allocation5 + $0x638] sm:$0xff]
    %v289 = vld [vmem:[#allocation5 + $0x640] sm:$0xff]
    %v290 = vld [vmem:[#allocation5 + $0x648] sm:$0xff]
    %v291 = vld [vmem:[#allocation5 + $0x650] sm:$0xff]
    %v292 = vld [vmem:[#allocation5 + $0x658] sm:$0xff]
    %v293 = vld [vmem:[#allocation5 + $0x660] sm:$0xff]
    %v294 = vld [vmem:[#allocation5 + $0x668] sm:$0xff]
    %v295 = vld [vmem:[#allocation5 + $0x670] sm:$0xff]
    %v296 = vld [vmem:[#allocation5 + $0x678] sm:$0xff]
    %v297 = vld [vmem:[#allocation5 + $0x680] sm:$0xff]
    %v298 = vld [vmem:[#allocation5 + $0x688] sm:$0xff]
    %v299 = vld [vmem:[#allocation5 + $0x690] sm:$0xff]
    %v300 = vld [vmem:[#allocation5 + $0x698] sm:$0xff]
    %v301 = vld [vmem:[#allocation5 + $0x6a0] sm:$0xff]
    %v302 = vld [vmem:[#allocation5 + $0x6a8] sm:$0xff]
    %v303 = vld [vmem:[#allocation5 + $0x6b0] sm:$0xff]
    %v304 = vld [vmem:[#allocation5 + $0x6b8] sm:$0xff]
    %v305 = vld [vmem:[#allocation5 + $0x6c0] sm:$0xff]
    %v306 = vld [vmem:[#allocation5 + $0x6c8] sm:$0xff]
    %v307 = vld [vmem:[#allocation5 + $0x6d0] sm:$0xff]
    %v308 = vld [vmem:[#allocation5 + $0x6d8] sm:$0xff]
    %v309 = vld [vmem:[#allocation5 + $0x6e0] sm:$0xff]
    %v310 = vld [vmem:[#allocation5 + $0x6e8] sm:$0xff]
    %v311 = vld [vmem:[#allocation5 + $0x6f0] sm:$0xff]
    %v312 = vld [vmem:[#allocation5 + $0x6f8] sm:$0xff]
    %v313 = vld [vmem:[#allocation5 + $0x700] sm:$0xff]
    %v314 = vld [vmem:[#allocation5 + $0x708] sm:$0xff]
    %v315 = vld [vmem:[#allocation5 + $0x710] sm:$0xff]
    %v316 = vld [vmem:[#allocation5 + $0x718] sm:$0xff]
    %v317 = vld [vmem:[#allocation5 + $0x720] sm:$0xff]
    %v318 = vld [vmem:[#allocation5 + $0x728] sm:$0xff]
    %v319 = vld [vmem:[#allocation5 + $0x730] sm:$0xff]
    %v320 = vld [vmem:[#allocation5 + $0x738] sm:$0xff]
    %v321 = vld [vmem:[#allocation5 + $0x740] sm:$0xff]
    %v322 = vld [vmem:[#allocation5 + $0x748] sm:$0xff]
    %v323 = vld [vmem:[#allocation5 + $0x750] sm:$0xff]
    %v324 = vld [vmem:[#allocation5 + $0x758] sm:$0xff]
    %v325 = vld [vmem:[#allocation5 + $0x760] sm:$0xff]
    %v326 = vld [vmem:[#allocation5 + $0x768] sm:$0xff]
    %v327 = vld [vmem:[#allocation5 + $0x770] sm:$0xff]
    %v328 = vld [vmem:[#allocation5 + $0x778] sm:$0xff]
    %v329 = vld [vmem:[#allocation5 + $0x780] sm:$0xff]
    %v330 = vld [vmem:[#allocation5 + $0x788] sm:$0xff]
    %v331 = vld [vmem:[#allocation5 + $0x790] sm:$0xff]
    %v332 = vld [vmem:[#allocation5 + $0x798] sm:$0xff]
    %v333 = vld [vmem:[#allocation5 + $0x7a0] sm:$0xff]
    %v334 = vld [vmem:[#allocation5 + $0x7a8] sm:$0xff]
    %v335 = vld [vmem:[#allocation5 + $0x7b0] sm:$0xff]
    %v336 = vld [vmem:[#allocation5 + $0x7b8] sm:$0xff]
    %v337 = vld [vmem:[#allocation5 + $0x7c0] sm:$0xff]
    %v338 = vld [vmem:[#allocation5 + $0x7c8] sm:$0xff]
    %v339 = vld [vmem:[#allocation5 + $0x7d0] sm:$0xff]
    %v340 = vld [vmem:[#allocation5 + $0x7d8] sm:$0xff]
    %v341 = vld [vmem:[#allocation5 + $0x7e0] sm:$0xff]
    %v342 = vld [vmem:[#allocation5 + $0x7e8] sm:$0xff]
    %v343 = vld [vmem:[#allocation5 + $0x7f0] sm:$0xff]
    %v344 = vld [vmem:[#allocation5 + $0x7f8] sm:$0xff]
    %v345 = vld [vmem:[%s1] sm:$0xff]
    %v346 = vld [vmem:[%s3] sm:$0xf]
    %348 = vset.pattern.permute.xlu0 0
    %349 = vperm.xlu0 %348, %v345
    %v350 = vpop.permute.xlu0 %349
    %v353 = vlaneseq
    %v354 = vshrl.u32 %v353, 7
    %v355 = vsub.s32 0, %v354
    %v356 = vrot.slane %v346, %v355
    %v357 = vlaneseq
    %v358 = vshrl.u32 %v357, 7
    %v359 = vsub.s32 1, %v358
    %v360 = vrot.slane %v346, %v359
    %v361 = vlaneseq
    %v362 = vshrl.u32 %v361, 7
    %v363 = vsub.s32 2, %v362
    %v364 = vrot.slane %v346, %v363
    %v365 = vlaneseq
    %v366 = vshrl.u32 %v365, 7
    %v367 = vsub.s32 3, %v366
    %v368 = vrot.slane %v346, %v367
    %v373 = vmul.f32 %v350, %v356
    %v374 = vmul.f32 %v350, %v360
    %v375 = vmul.f32 %v350, %v364
    %v376 = vmul.f32 %v350, %v368
    %v633 = vunpack.c.l.b16 %v89
    %v634 = vunpack.c.h.b16 %v89
    %v635 = vunpack.c.l.b16 %v90
    %v636 = vunpack.c.h.b16 %v90
    %v637 = vunpack.c.l.b16 %v91
    %v638 = vunpack.c.h.b16 %v91
    %v639 = vunpack.c.l.b16 %v92
    %v640 = vunpack.c.h.b16 %v92
    %v641 = vunpack.c.l.b16 %v93
    %v642 = vunpack.c.h.b16 %v93
    %v643 = vunpack.c.l.b16 %v94
    %v644 = vunpack.c.h.b16 %v94
    %v645 = vunpack.c.l.b16 %v95
    %v646 = vunpack.c.h.b16 %v95
    %v647 = vunpack.c.l.b16 %v96
    %v648 = vunpack.c.h.b16 %v96
    %v649 = vunpack.c.l.b16 %v97
    %v650 = vunpack.c.h.b16 %v97
    %v651 = vunpack.c.l.b16 %v98
    %v652 = vunpack.c.h.b16 %v98
    %v653 = vunpack.c.l.b16 %v99
    %v654 = vunpack.c.h.b16 %v99
    %v655 = vunpack.c.l.b16 %v100
    %v656 = vunpack.c.h.b16 %v100
    %v657 = vunpack.c.l.b16 %v101
    %v658 = vunpack.c.h.b16 %v101
    %v659 = vunpack.c.l.b16 %v102
    %v660 = vunpack.c.h.b16 %v102
    %v661 = vunpack.c.l.b16 %v103
    %v662 = vunpack.c.h.b16 %v103
    %v663 = vunpack.c.l.b16 %v104
    %v664 = vunpack.c.h.b16 %v104
    %v665 = vunpack.c.l.b16 %v105
    %v666 = vunpack.c.h.b16 %v105
    %v667 = vunpack.c.l.b16 %v106
    %v668 = vunpack.c.h.b16 %v106
    %v669 = vunpack.c.l.b16 %v107
    %v670 = vunpack.c.h.b16 %v107
    %v671 = vunpack.c.l.b16 %v108
    %v672 = vunpack.c.h.b16 %v108
    %v673 = vunpack.c.l.b16 %v109
    %v674 = vunpack.c.h.b16 %v109
    %v675 = vunpack.c.l.b16 %v110
    %v676 = vunpack.c.h.b16 %v110
    %v677 = vunpack.c.l.b16 %v111
    %v678 = vunpack.c.h.b16 %v111
    %v679 = vunpack.c.l.b16 %v112
    %v680 = vunpack.c.h.b16 %v112
    %v681 = vunpack.c.l.b16 %v113
    %v682 = vunpack.c.h.b16 %v113
    %v683 = vunpack.c.l.b16 %v114
    %v684 = vunpack.c.h.b16 %v114
    %v685 = vunpack.c.l.b16 %v115
    %v686 = vunpack.c.h.b16 %v115
    %v687 = vunpack.c.l.b16 %v116
    %v688 = vunpack.c.h.b16 %v116
    %v689 = vunpack.c.l.b16 %v117
    %v690 = vunpack.c.h.b16 %v117
    %v691 = vunpack.c.l.b16 %v118
    %v692 = vunpack.c.h.b16 %v118
    %v693 = vunpack.c.l.b16 %v119
    %v694 = vunpack.c.h.b16 %v119
    %v695 = vunpack.c.l.b16 %v120
    %v696 = vunpack.c.h.b16 %v120
    %v697 = vunpack.c.l.b16 %v121
    %v698 = vunpack.c.h.b16 %v121
    %v699 = vunpack.c.l.b16 %v122
    %v700 = vunpack.c.h.b16 %v122
    %v701 = vunpack.c.l.b16 %v123
    %v702 = vunpack.c.h.b16 %v123
    %v703 = vunpack.c.l.b16 %v124
    %v704 = vunpack.c.h.b16 %v124
    %v705 = vunpack.c.l.b16 %v125
    %v706 = vunpack.c.h.b16 %v125
    %v707 = vunpack.c.l.b16 %v126
    %v708 = vunpack.c.h.b16 %v126
    %v709 = vunpack.c.l.b16 %v127
    %v710 = vunpack.c.h.b16 %v127
    %v711 = vunpack.c.l.b16 %v128
    %v712 = vunpack.c.h.b16 %v128
    %v713 = vunpack.c.l.b16 %v129
    %v714 = vunpack.c.h.b16 %v129
    %v715 = vunpack.c.l.b16 %v130
    %v716 = vunpack.c.h.b16 %v130
    %v717 = vunpack.c.l.b16 %v131
    %v718 = vunpack.c.h.b16 %v131
    %v719 = vunpack.c.l.b16 %v132
    %v720 = vunpack.c.h.b16 %v132
    %v721 = vunpack.c.l.b16 %v133
    %v722 = vunpack.c.h.b16 %v133
    %v723 = vunpack.c.l.b16 %v134
    %v724 = vunpack.c.h.b16 %v134
    %v725 = vunpack.c.l.b16 %v135
    %v726 = vunpack.c.h.b16 %v135
    %v727 = vunpack.c.l.b16 %v136
    %v728 = vunpack.c.h.b16 %v136
    %v729 = vunpack.c.l.b16 %v137
    %v730 = vunpack.c.h.b16 %v137
    %v731 = vunpack.c.l.b16 %v138
    %v732 = vunpack.c.h.b16 %v138
    %v733 = vunpack.c.l.b16 %v139
    %v734 = vunpack.c.h.b16 %v139
    %v735 = vunpack.c.l.b16 %v140
    %v736 = vunpack.c.h.b16 %v140
    %v737 = vunpack.c.l.b16 %v141
    %v738 = vunpack.c.h.b16 %v141
    %v739 = vunpack.c.l.b16 %v142
    %v740 = vunpack.c.h.b16 %v142
    %v741 = vunpack.c.l.b16 %v143
    %v742 = vunpack.c.h.b16 %v143
    %v743 = vunpack.c.l.b16 %v144
    %v744 = vunpack.c.h.b16 %v144
    %v745 = vunpack.c.l.b16 %v145
    %v746 = vunpack.c.h.b16 %v145
    %v747 = vunpack.c.l.b16 %v146
    %v748 = vunpack.c.h.b16 %v146
    %v749 = vunpack.c.l.b16 %v147
    %v750 = vunpack.c.h.b16 %v147
    %v751 = vunpack.c.l.b16 %v148
    %v752 = vunpack.c.h.b16 %v148
    %v753 = vunpack.c.l.b16 %v149
    %v754 = vunpack.c.h.b16 %v149
    %v755 = vunpack.c.l.b16 %v150
    %v756 = vunpack.c.h.b16 %v150
    %v757 = vunpack.c.l.b16 %v151
    %v758 = vunpack.c.h.b16 %v151
    %v759 = vunpack.c.l.b16 %v152
    %v760 = vunpack.c.h.b16 %v152
    %v761 = vunpack.c.l.b16 %v153
    %v762 = vunpack.c.h.b16 %v153
    %v763 = vunpack.c.l.b16 %v154
    %v764 = vunpack.c.h.b16 %v154
    %v765 = vunpack.c.l.b16 %v155
    %v766 = vunpack.c.h.b16 %v155
    %v767 = vunpack.c.l.b16 %v156
    %v768 = vunpack.c.h.b16 %v156
    %v769 = vunpack.c.l.b16 %v157
    %v770 = vunpack.c.h.b16 %v157
    %v771 = vunpack.c.l.b16 %v158
    %v772 = vunpack.c.h.b16 %v158
    %v773 = vunpack.c.l.b16 %v159
    %v774 = vunpack.c.h.b16 %v159
    %v775 = vunpack.c.l.b16 %v160
    %v776 = vunpack.c.h.b16 %v160
    %v777 = vunpack.c.l.b16 %v161
    %v778 = vunpack.c.h.b16 %v161
    %v779 = vunpack.c.l.b16 %v162
    %v780 = vunpack.c.h.b16 %v162
    %v781 = vunpack.c.l.b16 %v163
    %v782 = vunpack.c.h.b16 %v163
    %v783 = vunpack.c.l.b16 %v164
    %v784 = vunpack.c.h.b16 %v164
    %v785 = vunpack.c.l.b16 %v165
    %v786 = vunpack.c.h.b16 %v165
    %v787 = vunpack.c.l.b16 %v166
    %v788 = vunpack.c.h.b16 %v166
    %v789 = vunpack.c.l.b16 %v167
    %v790 = vunpack.c.h.b16 %v167
    %v791 = vunpack.c.l.b16 %v168
    %v792 = vunpack.c.h.b16 %v168
    %v793 = vunpack.c.l.b16 %v169
    %v794 = vunpack.c.h.b16 %v169
    %v795 = vunpack.c.l.b16 %v170
    %v796 = vunpack.c.h.b16 %v170
    %v797 = vunpack.c.l.b16 %v171
    %v798 = vunpack.c.h.b16 %v171
    %v799 = vunpack.c.l.b16 %v172
    %v800 = vunpack.c.h.b16 %v172
    %v801 = vunpack.c.l.b16 %v173
    %v802 = vunpack.c.h.b16 %v173
    %v803 = vunpack.c.l.b16 %v174
    %v804 = vunpack.c.h.b16 %v174
    %v805 = vunpack.c.l.b16 %v175
    %v806 = vunpack.c.h.b16 %v175
    %v807 = vunpack.c.l.b16 %v176
    %v808 = vunpack.c.h.b16 %v176
    %v809 = vunpack.c.l.b16 %v177
    %v810 = vunpack.c.h.b16 %v177
    %v811 = vunpack.c.l.b16 %v178
    %v812 = vunpack.c.h.b16 %v178
    %v813 = vunpack.c.l.b16 %v179
    %v814 = vunpack.c.h.b16 %v179
    %v815 = vunpack.c.l.b16 %v180
    %v816 = vunpack.c.h.b16 %v180
    %v817 = vunpack.c.l.b16 %v181
    %v818 = vunpack.c.h.b16 %v181
    %v819 = vunpack.c.l.b16 %v182
    %v820 = vunpack.c.h.b16 %v182
    %v821 = vunpack.c.l.b16 %v183
    %v822 = vunpack.c.h.b16 %v183
    %v823 = vunpack.c.l.b16 %v184
    %v824 = vunpack.c.h.b16 %v184
    %v825 = vunpack.c.l.b16 %v185
    %v826 = vunpack.c.h.b16 %v185
    %v827 = vunpack.c.l.b16 %v186
    %v828 = vunpack.c.h.b16 %v186
    %v829 = vunpack.c.l.b16 %v187
    %v830 = vunpack.c.h.b16 %v187
    %v831 = vunpack.c.l.b16 %v188
    %v832 = vunpack.c.h.b16 %v188
    %v833 = vunpack.c.l.b16 %v189
    %v834 = vunpack.c.h.b16 %v189
    %v835 = vunpack.c.l.b16 %v190
    %v836 = vunpack.c.h.b16 %v190
    %v837 = vunpack.c.l.b16 %v191
    %v838 = vunpack.c.h.b16 %v191
    %v839 = vunpack.c.l.b16 %v192
    %v840 = vunpack.c.h.b16 %v192
    %v841 = vunpack.c.l.b16 %v193
    %v842 = vunpack.c.h.b16 %v193
    %v843 = vunpack.c.l.b16 %v194
    %v844 = vunpack.c.h.b16 %v194
    %v845 = vunpack.c.l.b16 %v195
    %v846 = vunpack.c.h.b16 %v195
    %v847 = vunpack.c.l.b16 %v196
    %v848 = vunpack.c.h.b16 %v196
    %v849 = vunpack.c.l.b16 %v197
    %v850 = vunpack.c.h.b16 %v197
    %v851 = vunpack.c.l.b16 %v198
    %v852 = vunpack.c.h.b16 %v198
    %v853 = vunpack.c.l.b16 %v199
    %v854 = vunpack.c.h.b16 %v199
    %v855 = vunpack.c.l.b16 %v200
    %v856 = vunpack.c.h.b16 %v200
    %v857 = vunpack.c.l.b16 %v201
    %v858 = vunpack.c.h.b16 %v201
    %v859 = vunpack.c.l.b16 %v202
    %v860 = vunpack.c.h.b16 %v202
    %v861 = vunpack.c.l.b16 %v203
    %v862 = vunpack.c.h.b16 %v203
    %v863 = vunpack.c.l.b16 %v204
    %v864 = vunpack.c.h.b16 %v204
    %v865 = vunpack.c.l.b16 %v205
    %v866 = vunpack.c.h.b16 %v205
    %v867 = vunpack.c.l.b16 %v206
    %v868 = vunpack.c.h.b16 %v206
    %v869 = vunpack.c.l.b16 %v207
    %v870 = vunpack.c.h.b16 %v207
    %v871 = vunpack.c.l.b16 %v208
    %v872 = vunpack.c.h.b16 %v208
    %v873 = vunpack.c.l.b16 %v209
    %v874 = vunpack.c.h.b16 %v209
    %v875 = vunpack.c.l.b16 %v210
    %v876 = vunpack.c.h.b16 %v210
    %v877 = vunpack.c.l.b16 %v211
    %v878 = vunpack.c.h.b16 %v211
    %v879 = vunpack.c.l.b16 %v212
    %v880 = vunpack.c.h.b16 %v212
    %v881 = vunpack.c.l.b16 %v213
    %v882 = vunpack.c.h.b16 %v213
    %v883 = vunpack.c.l.b16 %v214
    %v884 = vunpack.c.h.b16 %v214
    %v885 = vunpack.c.l.b16 %v215
    %v886 = vunpack.c.h.b16 %v215
    %v887 = vunpack.c.l.b16 %v216
    %v888 = vunpack.c.h.b16 %v216
    %v889 = vunpack.c.l.b16 %v217
    %v890 = vunpack.c.h.b16 %v217
    %v891 = vunpack.c.l.b16 %v218
    %v892 = vunpack.c.h.b16 %v218
    %v893 = vunpack.c.l.b16 %v219
    %v894 = vunpack.c.h.b16 %v219
    %v895 = vunpack.c.l.b16 %v220
    %v896 = vunpack.c.h.b16 %v220
    %v897 = vunpack.c.l.b16 %v221
    %v898 = vunpack.c.h.b16 %v221
    %v899 = vunpack.c.l.b16 %v222
    %v900 = vunpack.c.h.b16 %v222
    %v901 = vunpack.c.l.b16 %v223
    %v902 = vunpack.c.h.b16 %v223
    %v903 = vunpack.c.l.b16 %v224
    %v904 = vunpack.c.h.b16 %v224
    %v905 = vunpack.c.l.b16 %v225
    %v906 = vunpack.c.h.b16 %v225
    %v907 = vunpack.c.l.b16 %v226
    %v908 = vunpack.c.h.b16 %v226
    %v909 = vunpack.c.l.b16 %v227
    %v910 = vunpack.c.h.b16 %v227
    %v911 = vunpack.c.l.b16 %v228
    %v912 = vunpack.c.h.b16 %v228
    %v913 = vunpack.c.l.b16 %v229
    %v914 = vunpack.c.h.b16 %v229
    %v915 = vunpack.c.l.b16 %v230
    %v916 = vunpack.c.h.b16 %v230
    %v917 = vunpack.c.l.b16 %v231
    %v918 = vunpack.c.h.b16 %v231
    %v919 = vunpack.c.l.b16 %v232
    %v920 = vunpack.c.h.b16 %v232
    %v921 = vunpack.c.l.b16 %v233
    %v922 = vunpack.c.h.b16 %v233
    %v923 = vunpack.c.l.b16 %v234
    %v924 = vunpack.c.h.b16 %v234
    %v925 = vunpack.c.l.b16 %v235
    %v926 = vunpack.c.h.b16 %v235
    %v927 = vunpack.c.l.b16 %v236
    %v928 = vunpack.c.h.b16 %v236
    %v929 = vunpack.c.l.b16 %v237
    %v930 = vunpack.c.h.b16 %v237
    %v931 = vunpack.c.l.b16 %v238
    %v932 = vunpack.c.h.b16 %v238
    %v933 = vunpack.c.l.b16 %v239
    %v934 = vunpack.c.h.b16 %v239
    %v935 = vunpack.c.l.b16 %v240
    %v936 = vunpack.c.h.b16 %v240
    %v937 = vunpack.c.l.b16 %v241
    %v938 = vunpack.c.h.b16 %v241
    %v939 = vunpack.c.l.b16 %v242
    %v940 = vunpack.c.h.b16 %v242
    %v941 = vunpack.c.l.b16 %v243
    %v942 = vunpack.c.h.b16 %v243
    %v943 = vunpack.c.l.b16 %v244
    %v944 = vunpack.c.h.b16 %v244
    %v945 = vunpack.c.l.b16 %v245
    %v946 = vunpack.c.h.b16 %v245
    %v947 = vunpack.c.l.b16 %v246
    %v948 = vunpack.c.h.b16 %v246
    %v949 = vunpack.c.l.b16 %v247
    %v950 = vunpack.c.h.b16 %v247
    %v951 = vunpack.c.l.b16 %v248
    %v952 = vunpack.c.h.b16 %v248
    %v953 = vunpack.c.l.b16 %v249
    %v954 = vunpack.c.h.b16 %v249
    %v955 = vunpack.c.l.b16 %v250
    %v956 = vunpack.c.h.b16 %v250
    %v957 = vunpack.c.l.b16 %v251
    %v958 = vunpack.c.h.b16 %v251
    %v959 = vunpack.c.l.b16 %v252
    %v960 = vunpack.c.h.b16 %v252
    %v961 = vunpack.c.l.b16 %v253
    %v962 = vunpack.c.h.b16 %v253
    %v963 = vunpack.c.l.b16 %v254
    %v964 = vunpack.c.h.b16 %v254
    %v965 = vunpack.c.l.b16 %v255
    %v966 = vunpack.c.h.b16 %v255
    %v967 = vunpack.c.l.b16 %v256
    %v968 = vunpack.c.h.b16 %v256
    %v969 = vunpack.c.l.b16 %v257
    %v970 = vunpack.c.h.b16 %v257
    %v971 = vunpack.c.l.b16 %v258
    %v972 = vunpack.c.h.b16 %v258
    %v973 = vunpack.c.l.b16 %v259
    %v974 = vunpack.c.h.b16 %v259
    %v975 = vunpack.c.l.b16 %v260
    %v976 = vunpack.c.h.b16 %v260
    %v977 = vunpack.c.l.b16 %v261
    %v978 = vunpack.c.h.b16 %v261
    %v979 = vunpack.c.l.b16 %v262
    %v980 = vunpack.c.h.b16 %v262
    %v981 = vunpack.c.l.b16 %v263
    %v982 = vunpack.c.h.b16 %v263
    %v983 = vunpack.c.l.b16 %v264
    %v984 = vunpack.c.h.b16 %v264
    %v985 = vunpack.c.l.b16 %v265
    %v986 = vunpack.c.h.b16 %v265
    %v987 = vunpack.c.l.b16 %v266
    %v988 = vunpack.c.h.b16 %v266
    %v989 = vunpack.c.l.b16 %v267
    %v990 = vunpack.c.h.b16 %v267
    %v991 = vunpack.c.l.b16 %v268
    %v992 = vunpack.c.h.b16 %v268
    %v993 = vunpack.c.l.b16 %v269
    %v994 = vunpack.c.h.b16 %v269
    %v995 = vunpack.c.l.b16 %v270
    %v996 = vunpack.c.h.b16 %v270
    %v997 = vunpack.c.l.b16 %v271
    %v998 = vunpack.c.h.b16 %v271
    %v999 = vunpack.c.l.b16 %v272
    %v1000 = vunpack.c.h.b16 %v272
    %v1001 = vunpack.c.l.b16 %v273
    %v1002 = vunpack.c.h.b16 %v273
    %v1003 = vunpack.c.l.b16 %v274
    %v1004 = vunpack.c.h.b16 %v274
    %v1005 = vunpack.c.l.b16 %v275
    %v1006 = vunpack.c.h.b16 %v275
    %v1007 = vunpack.c.l.b16 %v276
    %v1008 = vunpack.c.h.b16 %v276
    %v1009 = vunpack.c.l.b16 %v277
    %v1010 = vunpack.c.h.b16 %v277
    %v1011 = vunpack.c.l.b16 %v278
    %v1012 = vunpack.c.h.b16 %v278
    %v1013 = vunpack.c.l.b16 %v279
    %v1014 = vunpack.c.h.b16 %v279
    %v1015 = vunpack.c.l.b16 %v280
    %v1016 = vunpack.c.h.b16 %v280
    %v1017 = vunpack.c.l.b16 %v281
    %v1018 = vunpack.c.h.b16 %v281
    %v1019 = vunpack.c.l.b16 %v282
    %v1020 = vunpack.c.h.b16 %v282
    %v1021 = vunpack.c.l.b16 %v283
    %v1022 = vunpack.c.h.b16 %v283
    %v1023 = vunpack.c.l.b16 %v284
    %v1024 = vunpack.c.h.b16 %v284
    %v1025 = vunpack.c.l.b16 %v285
    %v1026 = vunpack.c.h.b16 %v285
    %v1027 = vunpack.c.l.b16 %v286
    %v1028 = vunpack.c.h.b16 %v286
    %v1029 = vunpack.c.l.b16 %v287
    %v1030 = vunpack.c.h.b16 %v287
    %v1031 = vunpack.c.l.b16 %v288
    %v1032 = vunpack.c.h.b16 %v288
    %v1033 = vunpack.c.l.b16 %v289
    %v1034 = vunpack.c.h.b16 %v289
    %v1035 = vunpack.c.l.b16 %v290
    %v1036 = vunpack.c.h.b16 %v290
    %v1037 = vunpack.c.l.b16 %v291
    %v1038 = vunpack.c.h.b16 %v291
    %v1039 = vunpack.c.l.b16 %v292
    %v1040 = vunpack.c.h.b16 %v292
    %v1041 = vunpack.c.l.b16 %v293
    %v1042 = vunpack.c.h.b16 %v293
    %v1043 = vunpack.c.l.b16 %v294
    %v1044 = vunpack.c.h.b16 %v294
    %v1045 = vunpack.c.l.b16 %v295
    %v1046 = vunpack.c.h.b16 %v295
    %v1047 = vunpack.c.l.b16 %v296
    %v1048 = vunpack.c.h.b16 %v296
    %v1049 = vunpack.c.l.b16 %v297
    %v1050 = vunpack.c.h.b16 %v297
    %v1051 = vunpack.c.l.b16 %v298
    %v1052 = vunpack.c.h.b16 %v298
    %v1053 = vunpack.c.l.b16 %v299
    %v1054 = vunpack.c.h.b16 %v299
    %v1055 = vunpack.c.l.b16 %v300
    %v1056 = vunpack.c.h.b16 %v300
    %v1057 = vunpack.c.l.b16 %v301
    %v1058 = vunpack.c.h.b16 %v301
    %v1059 = vunpack.c.l.b16 %v302
    %v1060 = vunpack.c.h.b16 %v302
    %v1061 = vunpack.c.l.b16 %v303
    %v1062 = vunpack.c.h.b16 %v303
    %v1063 = vunpack.c.l.b16 %v304
    %v1064 = vunpack.c.h.b16 %v304
    %v1065 = vunpack.c.l.b16 %v305
    %v1066 = vunpack.c.h.b16 %v305
    %v1067 = vunpack.c.l.b16 %v306
    %v1068 = vunpack.c.h.b16 %v306
    %v1069 = vunpack.c.l.b16 %v307
    %v1070 = vunpack.c.h.b16 %v307
    %v1071 = vunpack.c.l.b16 %v308
    %v1072 = vunpack.c.h.b16 %v308
    %v1073 = vunpack.c.l.b16 %v309
    %v1074 = vunpack.c.h.b16 %v309
    %v1075 = vunpack.c.l.b16 %v310
    %v1076 = vunpack.c.h.b16 %v310
    %v1077 = vunpack.c.l.b16 %v311
    %v1078 = vunpack.c.h.b16 %v311
    %v1079 = vunpack.c.l.b16 %v312
    %v1080 = vunpack.c.h.b16 %v312
    %v1081 = vunpack.c.l.b16 %v313
    %v1082 = vunpack.c.h.b16 %v313
    %v1083 = vunpack.c.l.b16 %v314
    %v1084 = vunpack.c.h.b16 %v314
    %v1085 = vunpack.c.l.b16 %v315
    %v1086 = vunpack.c.h.b16 %v315
    %v1087 = vunpack.c.l.b16 %v316
    %v1088 = vunpack.c.h.b16 %v316
    %v1089 = vunpack.c.l.b16 %v317
    %v1090 = vunpack.c.h.b16 %v317
    %v1091 = vunpack.c.l.b16 %v318
    %v1092 = vunpack.c.h.b16 %v318
    %v1093 = vunpack.c.l.b16 %v319
    %v1094 = vunpack.c.h.b16 %v319
    %v1095 = vunpack.c.l.b16 %v320
    %v1096 = vunpack.c.h.b16 %v320
    %v1097 = vunpack.c.l.b16 %v321
    %v1098 = vunpack.c.h.b16 %v321
    %v1099 = vunpack.c.l.b16 %v322
    %v1100 = vunpack.c.h.b16 %v322
    %v1101 = vunpack.c.l.b16 %v323
    %v1102 = vunpack.c.h.b16 %v323
    %v1103 = vunpack.c.l.b16 %v324
    %v1104 = vunpack.c.h.b16 %v324
    %v1105 = vunpack.c.l.b16 %v325
    %v1106 = vunpack.c.h.b16 %v325
    %v1107 = vunpack.c.l.b16 %v326
    %v1108 = vunpack.c.h.b16 %v326
    %v1109 = vunpack.c.l.b16 %v327
    %v1110 = vunpack.c.h.b16 %v327
    %v1111 = vunpack.c.l.b16 %v328
    %v1112 = vunpack.c.h.b16 %v328
    %v1113 = vunpack.c.l.b16 %v329
    %v1114 = vunpack.c.h.b16 %v329
    %v1115 = vunpack.c.l.b16 %v330
    %v1116 = vunpack.c.h.b16 %v330
    %v1117 = vunpack.c.l.b16 %v331
    %v1118 = vunpack.c.h.b16 %v331
    %v1119 = vunpack.c.l.b16 %v332
    %v1120 = vunpack.c.h.b16 %v332
    %v1121 = vunpack.c.l.b16 %v333
    %v1122 = vunpack.c.h.b16 %v333
    %v1123 = vunpack.c.l.b16 %v334
    %v1124 = vunpack.c.h.b16 %v334
    %v1125 = vunpack.c.l.b16 %v335
    %v1126 = vunpack.c.h.b16 %v335
    %v1127 = vunpack.c.l.b16 %v336
    %v1128 = vunpack.c.h.b16 %v336
    %v1129 = vunpack.c.l.b16 %v337
    %v1130 = vunpack.c.h.b16 %v337
    %v1131 = vunpack.c.l.b16 %v338
    %v1132 = vunpack.c.h.b16 %v338
    %v1133 = vunpack.c.l.b16 %v339
    %v1134 = vunpack.c.h.b16 %v339
    %v1135 = vunpack.c.l.b16 %v340
    %v1136 = vunpack.c.h.b16 %v340
    %v1137 = vunpack.c.l.b16 %v341
    %v1138 = vunpack.c.h.b16 %v341
    %v1139 = vunpack.c.l.b16 %v342
    %v1140 = vunpack.c.h.b16 %v342
    %v1141 = vunpack.c.l.b16 %v343
    %v1142 = vunpack.c.h.b16 %v343
    %v1143 = vunpack.c.l.b16 %v344
    %v1144 = vunpack.c.h.b16 %v344
    %v1145 = vpack.c.b16 %v637, %v633
    %v1146 = vpack.c.b16 %v638, %v634
    %v1147 = vpack.c.b16 %v639, %v635
    %v1148 = vpack.c.b16 %v640, %v636
    %v1149 = vpack.c.b16 %v645, %v641
    %v1150 = vpack.c.b16 %v646, %v642
    %v1151 = vpack.c.b16 %v647, %v643
    %v1152 = vpack.c.b16 %v648, %v644
    %v1153 = vpack.c.b16 %v653, %v649
    %v1154 = vpack.c.b16 %v654, %v650
    %v1155 = vpack.c.b16 %v655, %v651
    %v1156 = vpack.c.b16 %v656, %v652
    %v1157 = vpack.c.b16 %v661, %v657
    %v1158 = vpack.c.b16 %v662, %v658
    %v1159 = vpack.c.b16 %v663, %v659
    %v1160 = vpack.c.b16 %v664, %v660
    %v1161 = vpack.c.b16 %v669, %v665
    %v1162 = vpack.c.b16 %v670, %v666
    %v1163 = vpack.c.b16 %v671, %v667
    %v1164 = vpack.c.b16 %v672, %v668
    %v1165 = vpack.c.b16 %v677, %v673
    %v1166 = vpack.c.b16 %v678, %v674
    %v1167 = vpack.c.b16 %v679, %v675
    %v1168 = vpack.c.b16 %v680, %v676
    %v1169 = vpack.c.b16 %v685, %v681
    %v1170 = vpack.c.b16 %v686, %v682
    %v1171 = vpack.c.b16 %v687, %v683
    %v1172 = vpack.c.b16 %v688, %v684
    %v1173 = vpack.c.b16 %v693, %v689
    %v1174 = vpack.c.b16 %v694, %v690
    %v1175 = vpack.c.b16 %v695, %v691
    %v1176 = vpack.c.b16 %v696, %v692
    %v1177 = vpack.c.b16 %v701, %v697
    %v1178 = vpack.c.b16 %v702, %v698
    %v1179 = vpack.c.b16 %v703, %v699
    %v1180 = vpack.c.b16 %v704, %v700
    %v1181 = vpack.c.b16 %v709, %v705
    %v1182 = vpack.c.b16 %v710, %v706
    %v1183 = vpack.c.b16 %v711, %v707
    %v1184 = vpack.c.b16 %v712, %v708
    %v1185 = vpack.c.b16 %v717, %v713
    %v1186 = vpack.c.b16 %v718, %v714
    %v1187 = vpack.c.b16 %v719, %v715
    %v1188 = vpack.c.b16 %v720, %v716
    %v1189 = vpack.c.b16 %v725, %v721
    %v1190 = vpack.c.b16 %v726, %v722
    %v1191 = vpack.c.b16 %v727, %v723
    %v1192 = vpack.c.b16 %v728, %v724
    %v1193 = vpack.c.b16 %v733, %v729
    %v1194 = vpack.c.b16 %v734, %v730
    %v1195 = vpack.c.b16 %v735, %v731
    %v1196 = vpack.c.b16 %v736, %v732
    %v1197 = vpack.c.b16 %v741, %v737
    %v1198 = vpack.c.b16 %v742, %v738
    %v1199 = vpack.c.b16 %v743, %v739
    %v1200 = vpack.c.b16 %v744, %v740
    %v1201 = vpack.c.b16 %v749, %v745
    %v1202 = vpack.c.b16 %v750, %v746
    %v1203 = vpack.c.b16 %v751, %v747
    %v1204 = vpack.c.b16 %v752, %v748
    %v1205 = vpack.c.b16 %v757, %v753
    %v1206 = vpack.c.b16 %v758, %v754
    %v1207 = vpack.c.b16 %v759, %v755
    %v1208 = vpack.c.b16 %v760, %v756
    %v1209 = vpack.c.b16 %v765, %v761
    %v1210 = vpack.c.b16 %v766, %v762
    %v1211 = vpack.c.b16 %v767, %v763
    %v1212 = vpack.c.b16 %v768, %v764
    %v1213 = vpack.c.b16 %v773, %v769
    %v1214 = vpack.c.b16 %v774, %v770
    %v1215 = vpack.c.b16 %v775, %v771
    %v1216 = vpack.c.b16 %v776, %v772
    %v1217 = vpack.c.b16 %v781, %v777
    %v1218 = vpack.c.b16 %v782, %v778
    %v1219 = vpack.c.b16 %v783, %v779
    %v1220 = vpack.c.b16 %v784, %v780
    %v1221 = vpack.c.b16 %v789, %v785
    %v1222 = vpack.c.b16 %v790, %v786
    %v1223 = vpack.c.b16 %v791, %v787
    %v1224 = vpack.c.b16 %v792, %v788
    %v1225 = vpack.c.b16 %v797, %v793
    %v1226 = vpack.c.b16 %v798, %v794
    %v1227 = vpack.c.b16 %v799, %v795
    %v1228 = vpack.c.b16 %v800, %v796
    %v1229 = vpack.c.b16 %v805, %v801
    %v1230 = vpack.c.b16 %v806, %v802
    %v1231 = vpack.c.b16 %v807, %v803
    %v1232 = vpack.c.b16 %v808, %v804
    %v1233 = vpack.c.b16 %v813, %v809
    %v1234 = vpack.c.b16 %v814, %v810
    %v1235 = vpack.c.b16 %v815, %v811
    %v1236 = vpack.c.b16 %v816, %v812
    %v1237 = vpack.c.b16 %v821, %v817
    %v1238 = vpack.c.b16 %v822, %v818
    %v1239 = vpack.c.b16 %v823, %v819
    %v1240 = vpack.c.b16 %v824, %v820
    %v1241 = vpack.c.b16 %v829, %v825
    %v1242 = vpack.c.b16 %v830, %v826
    %v1243 = vpack.c.b16 %v831, %v827
    %v1244 = vpack.c.b16 %v832, %v828
    %v1245 = vpack.c.b16 %v837, %v833
    %v1246 = vpack.c.b16 %v838, %v834
    %v1247 = vpack.c.b16 %v839, %v835
    %v1248 = vpack.c.b16 %v840, %v836
    %v1249 = vpack.c.b16 %v845, %v841
    %v1250 = vpack.c.b16 %v846, %v842
    %v1251 = vpack.c.b16 %v847, %v843
    %v1252 = vpack.c.b16 %v848, %v844
    %v1253 = vpack.c.b16 %v853, %v849
    %v1254 = vpack.c.b16 %v854, %v850
    %v1255 = vpack.c.b16 %v855, %v851
    %v1256 = vpack.c.b16 %v856, %v852
    %v1257 = vpack.c.b16 %v861, %v857
    %v1258 = vpack.c.b16 %v862, %v858
    %v1259 = vpack.c.b16 %v863, %v859
    %v1260 = vpack.c.b16 %v864, %v860
    %v1261 = vpack.c.b16 %v869, %v865
    %v1262 = vpack.c.b16 %v870, %v866
    %v1263 = vpack.c.b16 %v871, %v867
    %v1264 = vpack.c.b16 %v872, %v868
    %v1265 = vpack.c.b16 %v877, %v873
    %v1266 = vpack.c.b16 %v878, %v874
    %v1267 = vpack.c.b16 %v879, %v875
    %v1268 = vpack.c.b16 %v880, %v876
    %v1269 = vpack.c.b16 %v885, %v881
    %v1270 = vpack.c.b16 %v886, %v882
    %v1271 = vpack.c.b16 %v887, %v883
    %v1272 = vpack.c.b16 %v888, %v884
    %v1273 = vpack.c.b16 %v893, %v889
    %v1274 = vpack.c.b16 %v894, %v890
    %v1275 = vpack.c.b16 %v895, %v891
    %v1276 = vpack.c.b16 %v896, %v892
    %v1277 = vpack.c.b16 %v901, %v897
    %v1278 = vpack.c.b16 %v902, %v898
    %v1279 = vpack.c.b16 %v903, %v899
    %v1280 = vpack.c.b16 %v904, %v900
    %v1281 = vpack.c.b16 %v909, %v905
    %v1282 = vpack.c.b16 %v910, %v906
    %v1283 = vpack.c.b16 %v911, %v907
    %v1284 = vpack.c.b16 %v912, %v908
    %v1285 = vpack.c.b16 %v917, %v913
    %v1286 = vpack.c.b16 %v918, %v914
    %v1287 = vpack.c.b16 %v919, %v915
    %v1288 = vpack.c.b16 %v920, %v916
    %v1289 = vpack.c.b16 %v925, %v921
    %v1290 = vpack.c.b16 %v926, %v922
    %v1291 = vpack.c.b16 %v927, %v923
    %v1292 = vpack.c.b16 %v928, %v924
    %v1293 = vpack.c.b16 %v933, %v929
    %v1294 = vpack.c.b16 %v934, %v930
    %v1295 = vpack.c.b16 %v935, %v931
    %v1296 = vpack.c.b16 %v936, %v932
    %v1297 = vpack.c.b16 %v941, %v937
    %v1298 = vpack.c.b16 %v942, %v938
    %v1299 = vpack.c.b16 %v943, %v939
    %v1300 = vpack.c.b16 %v944, %v940
    %v1301 = vpack.c.b16 %v949, %v945
    %v1302 = vpack.c.b16 %v950, %v946
    %v1303 = vpack.c.b16 %v951, %v947
    %v1304 = vpack.c.b16 %v952, %v948
    %v1305 = vpack.c.b16 %v957, %v953
    %v1306 = vpack.c.b16 %v958, %v954
    %v1307 = vpack.c.b16 %v959, %v955
    %v1308 = vpack.c.b16 %v960, %v956
    %v1309 = vpack.c.b16 %v965, %v961
    %v1310 = vpack.c.b16 %v966, %v962
    %v1311 = vpack.c.b16 %v967, %v963
    %v1312 = vpack.c.b16 %v968, %v964
    %v1313 = vpack.c.b16 %v973, %v969
    %v1314 = vpack.c.b16 %v974, %v970
    %v1315 = vpack.c.b16 %v975, %v971
    %v1316 = vpack.c.b16 %v976, %v972
    %v1317 = vpack.c.b16 %v981, %v977
    %v1318 = vpack.c.b16 %v982, %v978
    %v1319 = vpack.c.b16 %v983, %v979
    %v1320 = vpack.c.b16 %v984, %v980
    %v1321 = vpack.c.b16 %v989, %v985
    %v1322 = vpack.c.b16 %v990, %v986
    %v1323 = vpack.c.b16 %v991, %v987
    %v1324 = vpack.c.b16 %v992, %v988
    %v1325 = vpack.c.b16 %v997, %v993
    %v1326 = vpack.c.b16 %v998, %v994
    %v1327 = vpack.c.b16 %v999, %v995
    %v1328 = vpack.c.b16 %v1000, %v996
    %v1329 = vpack.c.b16 %v1005, %v1001
    %v1330 = vpack.c.b16 %v1006, %v1002
    %v1331 = vpack.c.b16 %v1007, %v1003
    %v1332 = vpack.c.b16 %v1008, %v1004
    %v1333 = vpack.c.b16 %v1013, %v1009
    %v1334 = vpack.c.b16 %v1014, %v1010
    %v1335 = vpack.c.b16 %v1015, %v1011
    %v1336 = vpack.c.b16 %v1016, %v1012
    %v1337 = vpack.c.b16 %v1021, %v1017
    %v1338 = vpack.c.b16 %v1022, %v1018
    %v1339 = vpack.c.b16 %v1023, %v1019
    %v1340 = vpack.c.b16 %v1024, %v1020
    %v1341 = vpack.c.b16 %v1029, %v1025
    %v1342 = vpack.c.b16 %v1030, %v1026
    %v1343 = vpack.c.b16 %v1031, %v1027
    %v1344 = vpack.c.b16 %v1032, %v1028
    %v1345 = vpack.c.b16 %v1037, %v1033
    %v1346 = vpack.c.b16 %v1038, %v1034
    %v1347 = vpack.c.b16 %v1039, %v1035
    %v1348 = vpack.c.b16 %v1040, %v1036
    %v1349 = vpack.c.b16 %v1045, %v1041
    %v1350 = vpack.c.b16 %v1046, %v1042
    %v1351 = vpack.c.b16 %v1047, %v1043
    %v1352 = vpack.c.b16 %v1048, %v1044
    %v1353 = vpack.c.b16 %v1053, %v1049
    %v1354 = vpack.c.b16 %v1054, %v1050
    %v1355 = vpack.c.b16 %v1055, %v1051
    %v1356 = vpack.c.b16 %v1056, %v1052
    %v1357 = vpack.c.b16 %v1061, %v1057
    %v1358 = vpack.c.b16 %v1062, %v1058
    %v1359 = vpack.c.b16 %v1063, %v1059
    %v1360 = vpack.c.b16 %v1064, %v1060
    %v1361 = vpack.c.b16 %v1069, %v1065
    %v1362 = vpack.c.b16 %v1070, %v1066
    %v1363 = vpack.c.b16 %v1071, %v1067
    %v1364 = vpack.c.b16 %v1072, %v1068
    %v1365 = vpack.c.b16 %v1077, %v1073
    %v1366 = vpack.c.b16 %v1078, %v1074
    %v1367 = vpack.c.b16 %v1079, %v1075
    %v1368 = vpack.c.b16 %v1080, %v1076
    %v1369 = vpack.c.b16 %v1085, %v1081
    %v1370 = vpack.c.b16 %v1086, %v1082
    %v1371 = vpack.c.b16 %v1087, %v1083
    %v1372 = vpack.c.b16 %v1088, %v1084
    %v1373 = vpack.c.b16 %v1093, %v1089
    %v1374 = vpack.c.b16 %v1094, %v1090
    %v1375 = vpack.c.b16 %v1095, %v1091
    %v1376 = vpack.c.b16 %v1096, %v1092
    %v1377 = vpack.c.b16 %v1101, %v1097
    %v1378 = vpack.c.b16 %v1102, %v1098
    %v1379 = vpack.c.b16 %v1103, %v1099
    %v1380 = vpack.c.b16 %v1104, %v1100
    %v1381 = vpack.c.b16 %v1109, %v1105
    %v1382 = vpack.c.b16 %v1110, %v1106
    %v1383 = vpack.c.b16 %v1111, %v1107
    %v1384 = vpack.c.b16 %v1112, %v1108
    %v1385 = vpack.c.b16 %v1117, %v1113
    %v1386 = vpack.c.b16 %v1118, %v1114
    %v1387 = vpack.c.b16 %v1119, %v1115
    %v1388 = vpack.c.b16 %v1120, %v1116
    %v1389 = vpack.c.b16 %v1125, %v1121
    %v1390 = vpack.c.b16 %v1126, %v1122
    %v1391 = vpack.c.b16 %v1127, %v1123
    %v1392 = vpack.c.b16 %v1128, %v1124
    %v1393 = vpack.c.b16 %v1133, %v1129
    %v1394 = vpack.c.b16 %v1134, %v1130
    %v1395 = vpack.c.b16 %v1135, %v1131
    %v1396 = vpack.c.b16 %v1136, %v1132
    %v1397 = vpack.c.b16 %v1141, %v1137
    %v1398 = vpack.c.b16 %v1142, %v1138
    %v1399 = vpack.c.b16 %v1143, %v1139
    %v1400 = vpack.c.b16 %v1144, %v1140
    %1657 = vmatprep.subr.bf16.mxu0 %v1146
    %1658 = vmatpush1.bf16.msra.mxu0 %v1145
    %1659 = vmatprep.subr.bf16.mxu0 %v1150
    %1660 = vmatpush1.bf16.msra.mxu0 %v1149
    %1661 = vmatprep.subr.bf16.mxu0 %v1154
    %1662 = vmatpush1.bf16.msra.mxu0 %v1153
    %1663 = vmatprep.subr.bf16.mxu0 %v1158
    %1664 = vmatpush1.bf16.msra.mxu0 %v1157
    %1665 = vmatprep.subr.bf16.mxu0 %v1162
    %1666 = vmatpush1.bf16.msra.mxu0 %v1161
    %1667 = vmatprep.subr.bf16.mxu0 %v1166
    %1668 = vmatpush1.bf16.msra.mxu0 %v1165
    %1669 = vmatprep.subr.bf16.mxu0 %v1170
    %1670 = vmatpush1.bf16.msra.mxu0 %v1169
    %1671 = vmatprep.subr.bf16.mxu0 %v1174
    %1672 = vmatpush1.bf16.msra.mxu0 %v1173
    %1673 = vmatprep.subr.bf16.mxu0 %v1178
    %1674 = vmatpush1.bf16.msra.mxu0 %v1177
    %1675 = vmatprep.subr.bf16.mxu0 %v1182
    %1676 = vmatpush1.bf16.msra.mxu0 %v1181
    %1677 = vmatprep.subr.bf16.mxu0 %v1186
    %1678 = vmatpush1.bf16.msra.mxu0 %v1185
    %1679 = vmatprep.subr.bf16.mxu0 %v1190
    %1680 = vmatpush1.bf16.msra.mxu0 %v1189
    %1681 = vmatprep.subr.bf16.mxu0 %v1194
    %1682 = vmatpush1.bf16.msra.mxu0 %v1193
    %1683 = vmatprep.subr.bf16.mxu0 %v1198
    %1684 = vmatpush1.bf16.msra.mxu0 %v1197
    %1685 = vmatprep.subr.bf16.mxu0 %v1202
    %1686 = vmatpush1.bf16.msra.mxu0 %v1201
    %1687 = vmatprep.subr.bf16.mxu0 %v1206
    %1688 = vmatpush1.bf16.msra.mxu0 %v1205
    %1689 = vmatprep.mubr.bf16.mxu0 %v82
    %1690 = vmatmul.mubr.bf16.gmra.mrb[0].mxu0 %v81
    %v1691 = vpop.f32.mrb[0].mxu0
    %v1692 = vadd.f32 %v373, %v1691
    %v1693 = vpop.f32.mrb[0].mxu0
    %v1694 = vadd.f32 %v374, %v1693
    %v1695 = vpop.f32.mrb[0].mxu0
    %v1696 = vpop.f32.mrb[0].mxu0
    %1697 = vdwg.mxu0
    %1698 = vmatprep.subr.bf16.mxu0 %v1210
    %1699 = vmatpush1.bf16.msra.mxu0 %v1209
    %1700 = vmatprep.subr.bf16.mxu0 %v1214
    %1701 = vmatpush1.bf16.msra.mxu0 %v1213
    %1702 = vmatprep.subr.bf16.mxu0 %v1218
    %1703 = vmatpush1.bf16.msra.mxu0 %v1217
    %1704 = vmatprep.subr.bf16.mxu0 %v1222
    %1705 = vmatpush1.bf16.msra.mxu0 %v1221
    %1706 = vmatprep.subr.bf16.mxu0 %v1226
    %1707 = vmatpush1.bf16.msra.mxu0 %v1225
    %1708 = vmatprep.subr.bf16.mxu0 %v1230
    %1709 = vmatpush1.bf16.msra.mxu0 %v1229
    %1710 = vmatprep.subr.bf16.mxu0 %v1234
    %1711 = vmatpush1.bf16.msra.mxu0 %v1233
    %1712 = vmatprep.subr.bf16.mxu0 %v1238
    %1713 = vmatpush1.bf16.msra.mxu0 %v1237
    %1714 = vmatprep.subr.bf16.mxu0 %v1242
    %1715 = vmatpush1.bf16.msra.mxu0 %v1241
    %1716 = vmatprep.subr.bf16.mxu0 %v1246
    %1717 = vmatpush1.bf16.msra.mxu0 %v1245
    %1718 = vmatprep.subr.bf16.mxu0 %v1250
    %1719 = vmatpush1.bf16.msra.mxu0 %v1249
    %1720 = vmatprep.subr.bf16.mxu0 %v1254
    %1721 = vmatpush1.bf16.msra.mxu0 %v1253
    %1722 = vmatprep.subr.bf16.mxu0 %v1258
    %1723 = vmatpush1.bf16.msra.mxu0 %v1257
    %1724 = vmatprep.subr.bf16.mxu0 %v1262
    %1725 = vmatpush1.bf16.msra.mxu0 %v1261
    %1726 = vmatprep.subr.bf16.mxu0 %v1266
    %1727 = vmatpush1.bf16.msra.mxu0 %v1265
    %1728 = vmatprep.subr.bf16.mxu0 %v1270
    %1729 = vmatpush1.bf16.msra.mxu0 %v1269
    %1730 = vmatprep.mubr.bf16.mxu0 %v84
    %1731 = vmatmul.mubr.bf16.gmra.mrb[0].mxu0 %v83
    %v1732 = vpop.f32.mrb[0].mxu0
    %v1733 = vadd.f32 %v1692, %v1732
    %v1734 = vpop.f32.mrb[0].mxu0
    %v1735 = vadd.f32 %v1694, %v1734
    %v1736 = vpop.f32.mrb[0].mxu0
    %v1737 = vpop.f32.mrb[0].mxu0
    %1738 = vdwg.mxu0
    %1739 = vmatprep.subr.bf16.mxu0 %v1274
    %1740 = vmatpush1.bf16.msra.mxu0 %v1273
    %1741 = vmatprep.subr.bf16.mxu0 %v1278
    %1742 = vmatpush1.bf16.msra.mxu0 %v1277
    %1743 = vmatprep.subr.bf16.mxu0 %v1282
    %1744 = vmatpush1.bf16.msra.mxu0 %v1281
    %1745 = vmatprep.subr.bf16.mxu0 %v1286
    %1746 = vmatpush1.bf16.msra.mxu0 %v1285
    %1747 = vmatprep.subr.bf16.mxu0 %v1290
    %1748 = vmatpush1.bf16.msra.mxu0 %v1289
    %1749 = vmatprep.subr.bf16.mxu0 %v1294
    %1750 = vmatpush1.bf16.msra.mxu0 %v1293
    %1751 = vmatprep.subr.bf16.mxu0 %v1298
    %1752 = vmatpush1.bf16.msra.mxu0 %v1297
    %1753 = vmatprep.subr.bf16.mxu0 %v1302
    %1754 = vmatpush1.bf16.msra.mxu0 %v1301
    %1755 = vmatprep.subr.bf16.mxu0 %v1306
    %1756 = vmatpush1.bf16.msra.mxu0 %v1305
    %1757 = vmatprep.subr.bf16.mxu0 %v1310
    %1758 = vmatpush1.bf16.msra.mxu0 %v1309
    %1759 = vmatprep.subr.bf16.mxu0 %v1314
    %1760 = vmatpush1.bf16.msra.mxu0 %v1313
    %1761 = vmatprep.subr.bf16.mxu0 %v1318
    %1762 = vmatpush1.bf16.msra.mxu0 %v1317
    %1763 = vmatprep.subr.bf16.mxu0 %v1322
    %1764 = vmatpush1.bf16.msra.mxu0 %v1321
    %1765 = vmatprep.subr.bf16.mxu0 %v1326
    %1766 = vmatpush1.bf16.msra.mxu0 %v1325
    %1767 = vmatprep.subr.bf16.mxu0 %v1330
    %1768 = vmatpush1.bf16.msra.mxu0 %v1329
    %1769 = vmatprep.subr.bf16.mxu0 %v1334
    %1770 = vmatpush1.bf16.msra.mxu0 %v1333
    %1771 = vmatprep.mubr.bf16.mxu0 %v86
    %1772 = vmatmul.mubr.bf16.gmra.mrb[0].mxu0 %v85
    %v1773 = vpop.f32.mrb[0].mxu0
    %v1774 = vadd.f32 %v1733, %v1773
    %v1775 = vpop.f32.mrb[0].mxu0
    %v1776 = vadd.f32 %v1735, %v1775
    %v1777 = vpop.f32.mrb[0].mxu0
    %v1778 = vpop.f32.mrb[0].mxu0
    %1779 = vdwg.mxu0
    %1780 = vmatprep.subr.bf16.mxu0 %v1338
    %1781 = vmatpush1.bf16.msra.mxu0 %v1337
    %1782 = vmatprep.subr.bf16.mxu0 %v1342
    %1783 = vmatpush1.bf16.msra.mxu0 %v1341
    %1784 = vmatprep.subr.bf16.mxu0 %v1346
    %1785 = vmatpush1.bf16.msra.mxu0 %v1345
    %1786 = vmatprep.subr.bf16.mxu0 %v1350
    %1787 = vmatpush1.bf16.msra.mxu0 %v1349
    %1788 = vmatprep.subr.bf16.mxu0 %v1354
    %1789 = vmatpush1.bf16.msra.mxu0 %v1353
    %1790 = vmatprep.subr.bf16.mxu0 %v1358
    %1791 = vmatpush1.bf16.msra.mxu0 %v1357
    %1792 = vmatprep.subr.bf16.mxu0 %v1362
    %1793 = vmatpush1.bf16.msra.mxu0 %v1361
    %1794 = vmatprep.subr.bf16.mxu0 %v1366
    %1795 = vmatpush1.bf16.msra.mxu0 %v1365
    %1796 = vmatprep.subr.bf16.mxu0 %v1370
    %1797 = vmatpush1.bf16.msra.mxu0 %v1369
    %1798 = vmatprep.subr.bf16.mxu0 %v1374
    %1799 = vmatpush1.bf16.msra.mxu0 %v1373
    %1800 = vmatprep.subr.bf16.mxu0 %v1378
    %1801 = vmatpush1.bf16.msra.mxu0 %v1377
    %1802 = vmatprep.subr.bf16.mxu0 %v1382
    %1803 = vmatpush1.bf16.msra.mxu0 %v1381
    %1804 = vmatprep.subr.bf16.mxu0 %v1386
    %1805 = vmatpush1.bf16.msra.mxu0 %v1385
    %1806 = vmatprep.subr.bf16.mxu0 %v1390
    %1807 = vmatpush1.bf16.msra.mxu0 %v1389
    %1808 = vmatprep.subr.bf16.mxu0 %v1394
    %1809 = vmatpush1.bf16.msra.mxu0 %v1393
    %1810 = vmatprep.subr.bf16.mxu0 %v1398
    %1811 = vmatpush1.bf16.msra.mxu0 %v1397
    %1812 = vmatprep.mubr.bf16.mxu0 %v88
    %1813 = vmatmul.mubr.bf16.gmra.mrb[0].mxu0 %v87
    %v1814 = vpop.f32.mrb[0].mxu0
    %v1815 = vadd.f32 %v1774, %v1814
    %v1816 = vpop.f32.mrb[0].mxu0
    %v1817 = vadd.f32 %v1776, %v1816
    %v1818 = vpop.f32.mrb[0].mxu0
    %v1819 = vpop.f32.mrb[0].mxu0
    %1820 = vdwg.mxu0
    %1821 = vmatprep.subr.bf16.mxu0 %v1148
    %1822 = vmatpush1.bf16.msra.mxu0 %v1147
    %1823 = vmatprep.subr.bf16.mxu0 %v1152
    %1824 = vmatpush1.bf16.msra.mxu0 %v1151
    %1825 = vmatprep.subr.bf16.mxu0 %v1156
    %1826 = vmatpush1.bf16.msra.mxu0 %v1155
    %1827 = vmatprep.subr.bf16.mxu0 %v1160
    %1828 = vmatpush1.bf16.msra.mxu0 %v1159
    %1829 = vmatprep.subr.bf16.mxu0 %v1164
    %1830 = vmatpush1.bf16.msra.mxu0 %v1163
    %1831 = vmatprep.subr.bf16.mxu0 %v1168
    %1832 = vmatpush1.bf16.msra.mxu0 %v1167
    %1833 = vmatprep.subr.bf16.mxu0 %v1172
    %1834 = vmatpush1.bf16.msra.mxu0 %v1171
    %1835 = vmatprep.subr.bf16.mxu0 %v1176
    %1836 = vmatpush1.bf16.msra.mxu0 %v1175
    %1837 = vmatprep.subr.bf16.mxu0 %v1180
    %1838 = vmatpush1.bf16.msra.mxu0 %v1179
    %1839 = vmatprep.subr.bf16.mxu0 %v1184
    %1840 = vmatpush1.bf16.msra.mxu0 %v1183
    %1841 = vmatprep.subr.bf16.mxu0 %v1188
    %1842 = vmatpush1.bf16.msra.mxu0 %v1187
    %1843 = vmatprep.subr.bf16.mxu0 %v1192
    %1844 = vmatpush1.bf16.msra.mxu0 %v1191
    %1845 = vmatprep.subr.bf16.mxu0 %v1196
    %1846 = vmatpush1.bf16.msra.mxu0 %v1195
    %1847 = vmatprep.subr.bf16.mxu0 %v1200
    %1848 = vmatpush1.bf16.msra.mxu0 %v1199
    %1849 = vmatprep.subr.bf16.mxu0 %v1204
    %1850 = vmatpush1.bf16.msra.mxu0 %v1203
    %1851 = vmatprep.subr.bf16.mxu0 %v1208
    %1852 = vmatpush1.bf16.msra.mxu0 %v1207
    %1853 = vmatprep.mubr.bf16.mxu0 %v82
    %1854 = vmatmul.mubr.bf16.gmra.mrb[0].mxu0 %v81
    %v1855 = vpop.f32.mrb[0].mxu0
    %v1856 = vadd.f32 %v375, %v1855
    %v1857 = vpop.f32.mrb[0].mxu0
    %v1858 = vadd.f32 %v376, %v1857
    %v1859 = vpop.f32.mrb[0].mxu0
    %v1860 = vpop.f32.mrb[0].mxu0
    %1861 = vdwg.mxu0
    %1862 = vmatprep.subr.bf16.mxu0 %v1212
    %1863 = vmatpush1.bf16.msra.mxu0 %v1211
    %1864 = vmatprep.subr.bf16.mxu0 %v1216
    %1865 = vmatpush1.bf16.msra.mxu0 %v1215
    %1866 = vmatprep.subr.bf16.mxu0 %v1220
    %1867 = vmatpush1.bf16.msra.mxu0 %v1219
    %1868 = vmatprep.subr.bf16.mxu0 %v1224
    %1869 = vmatpush1.bf16.msra.mxu0 %v1223
    %1870 = vmatprep.subr.bf16.mxu0 %v1228
    %1871 = vmatpush1.bf16.msra.mxu0 %v1227
    %1872 = vmatprep.subr.bf16.mxu0 %v1232
    %1873 = vmatpush1.bf16.msra.mxu0 %v1231
    %1874 = vmatprep.subr.bf16.mxu0 %v1236
    %1875 = vmatpush1.bf16.msra.mxu0 %v1235
    %1876 = vmatprep.subr.bf16.mxu0 %v1240
    %1877 = vmatpush1.bf16.msra.mxu0 %v1239
    %1878 = vmatprep.subr.bf16.mxu0 %v1244
    %1879 = vmatpush1.bf16.msra.mxu0 %v1243
    %1880 = vmatprep.subr.bf16.mxu0 %v1248
    %1881 = vmatpush1.bf16.msra.mxu0 %v1247
    %1882 = vmatprep.subr.bf16.mxu0 %v1252
    %1883 = vmatpush1.bf16.msra.mxu0 %v1251
    %1884 = vmatprep.subr.bf16.mxu0 %v1256
    %1885 = vmatpush1.bf16.msra.mxu0 %v1255
    %1886 = vmatprep.subr.bf16.mxu0 %v1260
    %1887 = vmatpush1.bf16.msra.mxu0 %v1259
    %1888 = vmatprep.subr.bf16.mxu0 %v1264
    %1889 = vmatpush1.bf16.msra.mxu0 %v1263
    %1890 = vmatprep.subr.bf16.mxu0 %v1268
    %1891 = vmatpush1.bf16.msra.mxu0 %v1267
    %1892 = vmatprep.subr.bf16.mxu0 %v1272
    %1893 = vmatpush1.bf16.msra.mxu0 %v1271
    %1894 = vmatprep.mubr.bf16.mxu0 %v84
    %1895 = vmatmul.mubr.bf16.gmra.mrb[0].mxu0 %v83
    %v1896 = vpop.f32.mrb[0].mxu0
    %v1897 = vadd.f32 %v1856, %v1896
    %v1898 = vpop.f32.mrb[0].mxu0
    %v1899 = vadd.f32 %v1858, %v1898
    %v1900 = vpop.f32.mrb[0].mxu0
    %v1901 = vpop.f32.mrb[0].mxu0
    %1902 = vdwg.mxu0
    %1903 = vmatprep.subr.bf16.mxu0 %v1276
    %1904 = vmatpush1.bf16.msra.mxu0 %v1275
    %1905 = vmatprep.subr.bf16.mxu0 %v1280
    %1906 = vmatpush1.bf16.msra.mxu0 %v1279
    %1907 = vmatprep.subr.bf16.mxu0 %v1284
    %1908 = vmatpush1.bf16.msra.mxu0 %v1283
    %1909 = vmatprep.subr.bf16.mxu0 %v1288
    %1910 = vmatpush1.bf16.msra.mxu0 %v1287
    %1911 = vmatprep.subr.bf16.mxu0 %v1292
    %1912 = vmatpush1.bf16.msra.mxu0 %v1291
    %1913 = vmatprep.subr.bf16.mxu0 %v1296
    %1914 = vmatpush1.bf16.msra.mxu0 %v1295
    %1915 = vmatprep.subr.bf16.mxu0 %v1300
    %1916 = vmatpush1.bf16.msra.mxu0 %v1299
    %1917 = vmatprep.subr.bf16.mxu0 %v1304
    %1918 = vmatpush1.bf16.msra.mxu0 %v1303
    %1919 = vmatprep.subr.bf16.mxu0 %v1308
    %1920 = vmatpush1.bf16.msra.mxu0 %v1307
    %1921 = vmatprep.subr.bf16.mxu0 %v1312
    %1922 = vmatpush1.bf16.msra.mxu0 %v1311
    %1923 = vmatprep.subr.bf16.mxu0 %v1316
    %1924 = vmatpush1.bf16.msra.mxu0 %v1315
    %1925 = vmatprep.subr.bf16.mxu0 %v1320
    %1926 = vmatpush1.bf16.msra.mxu0 %v1319
    %1927 = vmatprep.subr.bf16.mxu0 %v1324
    %1928 = vmatpush1.bf16.msra.mxu0 %v1323
    %1929 = vmatprep.subr.bf16.mxu0 %v1328
    %1930 = vmatpush1.bf16.msra.mxu0 %v1327
    %1931 = vmatprep.subr.bf16.mxu0 %v1332
    %1932 = vmatpush1.bf16.msra.mxu0 %v1331
    %1933 = vmatprep.subr.bf16.mxu0 %v1336
    %1934 = vmatpush1.bf16.msra.mxu0 %v1335
    %1935 = vmatprep.mubr.bf16.mxu0 %v86
    %1936 = vmatmul.mubr.bf16.gmra.mrb[0].mxu0 %v85
    %v1937 = vpop.f32.mrb[0].mxu0
    %v1938 = vadd.f32 %v1897, %v1937
    %v1939 = vpop.f32.mrb[0].mxu0
    %v1940 = vadd.f32 %v1899, %v1939
    %v1941 = vpop.f32.mrb[0].mxu0
    %v1942 = vpop.f32.mrb[0].mxu0
    %1943 = vdwg.mxu0
    %1944 = vmatprep.subr.bf16.mxu0 %v1340
    %1945 = vmatpush1.bf16.msra.mxu0 %v1339
    %1946 = vmatprep.subr.bf16.mxu0 %v1344
    %1947 = vmatpush1.bf16.msra.mxu0 %v1343
    %1948 = vmatprep.subr.bf16.mxu0 %v1348
    %1949 = vmatpush1.bf16.msra.mxu0 %v1347
    %1950 = vmatprep.subr.bf16.mxu0 %v1352
    %1951 = vmatpush1.bf16.msra.mxu0 %v1351
    %1952 = vmatprep.subr.bf16.mxu0 %v1356
    %1953 = vmatpush1.bf16.msra.mxu0 %v1355
    %1954 = vmatprep.subr.bf16.mxu0 %v1360
    %1955 = vmatpush1.bf16.msra.mxu0 %v1359
    %1956 = vmatprep.subr.bf16.mxu0 %v1364
    %1957 = vmatpush1.bf16.msra.mxu0 %v1363
    %1958 = vmatprep.subr.bf16.mxu0 %v1368
    %1959 = vmatpush1.bf16.msra.mxu0 %v1367
    %1960 = vmatprep.subr.bf16.mxu0 %v1372
    %1961 = vmatpush1.bf16.msra.mxu0 %v1371
    %1962 = vmatprep.subr.bf16.mxu0 %v1376
    %1963 = vmatpush1.bf16.msra.mxu0 %v1375
    %1964 = vmatprep.subr.bf16.mxu0 %v1380
    %1965 = vmatpush1.bf16.msra.mxu0 %v1379
    %1966 = vmatprep.subr.bf16.mxu0 %v1384
    %1967 = vmatpush1.bf16.msra.mxu0 %v1383
    %1968 = vmatprep.subr.bf16.mxu0 %v1388
    %1969 = vmatpush1.bf16.msra.mxu0 %v1387
    %1970 = vmatprep.subr.bf16.mxu0 %v1392
    %1971 = vmatpush1.bf16.msra.mxu0 %v1391
    %1972 = vmatprep.subr.bf16.mxu0 %v1396
    %1973 = vmatpush1.bf16.msra.mxu0 %v1395
    %1974 = vmatprep.subr.bf16.mxu0 %v1400
    %1975 = vmatpush1.bf16.msra.mxu0 %v1399
    %1976 = vmatprep.mubr.bf16.mxu0 %v88
    %1977 = vmatmul.mubr.bf16.gmra.mrb[0].mxu0 %v87
    %v1978 = vpop.f32.mrb[0].mxu0
    %v1979 = vadd.f32 %v1938, %v1978
    %v1980 = vpop.f32.mrb[0].mxu0
    %v1981 = vadd.f32 %v1940, %v1980
    %v1982 = vpop.f32.mrb[0].mxu0
    %v1983 = vpop.f32.mrb[0].mxu0
    %1984 = vdwg.mxu0
    %v1985 = vld [vmem:[%s4] sm:$0xf]
    %v1987 = vlaneseq
    %v1988 = vshrl.u32 %v1987, 7
    %v1989 = vsub.s32 0, %v1988
    %v1990 = vrot.slane %v1985, %v1989
    %v1991 = vlaneseq
    %v1992 = vshrl.u32 %v1991, 7
    %v1993 = vsub.s32 1, %v1992
    %v1994 = vrot.slane %v1985, %v1993
    %v1995 = vlaneseq
    %v1996 = vshrl.u32 %v1995, 7
    %v1997 = vsub.s32 2, %v1996
    %v1998 = vrot.slane %v1985, %v1997
    %v1999 = vlaneseq
    %v2000 = vshrl.u32 %v1999, 7
    %v2001 = vsub.s32 3, %v2000
    %v2002 = vrot.slane %v1985, %v2001
    %v2007 = vadd.f32 %v1815, %v1990
    %v2008 = vadd.f32 %v1817, %v1994
    %v2009 = vadd.f32 %v1979, %v1998
    %v2010 = vadd.f32 %v1981, %v2002
    %vm2011 = vcmp.gt.f32.partialorder %v2007, 0.0
    %vm2012 = vcmp.gt.f32.partialorder %v2008, 0.0
    %vm2013 = vcmp.gt.f32.partialorder %v2009, 0.0
    %vm2014 = vcmp.gt.f32.partialorder %v2010, 0.0
    %v2015 = vmul.f32 %v2007, 0.2
    %v2016 = vmul.f32 %v2008, 0.2
    %v2017 = vmul.f32 %v2009, 0.2
    %v2018 = vmul.f32 %v2010, 0.2
    %v2019 = vsel %vm2011, %v2007, %v2015
    %v2020 = vsel %vm2012, %v2008, %v2016
    %v2021 = vsel %vm2013, %v2009, %v2017
    %v2022 = vsel %vm2014, %v2010, %v2018
    %v2023 = vpack.c.bf16 %v2019, %v2019
    %v2024 = vpack.c.bf16 %v2020, %v2020
    %v2025 = vpack.c.bf16 %v2021, %v2021
    %v2026 = vpack.c.bf16 %v2022, %v2022
    %v2027 = vld [vmem:[#allocation7] sm:$0xff]
    %v2028 = vld [vmem:[#allocation7 + $0x8] sm:$0xff]
    %v2029 = vld [vmem:[#allocation7 + $0x10] sm:$0xff]
    %v2030 = vld [vmem:[#allocation7 + $0x18] sm:$0xff]
    %v2031 = vld [vmem:[#allocation7 + $0x20] sm:$0xff]
    %v2032 = vld [vmem:[#allocation7 + $0x28] sm:$0xff]
    %v2033 = vld [vmem:[#allocation7 + $0x30] sm:$0xff]
    %v2034 = vld [vmem:[#allocation7 + $0x38] sm:$0xff]
    %v2035 = vld [vmem:[#allocation7 + $0x40] sm:$0xff]
    %v2036 = vld [vmem:[#allocation7 + $0x48] sm:$0xff]
    %v2037 = vld [vmem:[#allocation7 + $0x50] sm:$0xff]
    %v2038 = vld [vmem:[#allocation7 + $0x58] sm:$0xff]
    %v2039 = vld [vmem:[#allocation7 + $0x60] sm:$0xff]
    %v2040 = vld [vmem:[#allocation7 + $0x68] sm:$0xff]
    %v2041 = vld [vmem:[#allocation7 + $0x70] sm:$0xff]
    %v2042 = vld [vmem:[#allocation7 + $0x78] sm:$0xff]
    %v2043 = vld [vmem:[#allocation7 + $0x80] sm:$0xff]
    %v2044 = vld [vmem:[#allocation7 + $0x88] sm:$0xff]
    %v2045 = vld [vmem:[#allocation7 + $0x90] sm:$0xff]
    %v2046 = vld [vmem:[#allocation7 + $0x98] sm:$0xff]
    %v2047 = vld [vmem:[#allocation7 + $0xa0] sm:$0xff]
    %v2048 = vld [vmem:[#allocation7 + $0xa8] sm:$0xff]
    %v2049 = vld [vmem:[#allocation7 + $0xb0] sm:$0xff]
    %v2050 = vld [vmem:[#allocation7 + $0xb8] sm:$0xff]
    %v2051 = vld [vmem:[#allocation7 + $0xc0] sm:$0xff]
    %v2052 = vld [vmem:[#allocation7 + $0xc8] sm:$0xff]
    %v2053 = vld [vmem:[#allocation7 + $0xd0] sm:$0xff]
    %v2054 = vld [vmem:[#allocation7 + $0xd8] sm:$0xff]
    %v2055 = vld [vmem:[#allocation7 + $0xe0] sm:$0xff]
    %v2056 = vld [vmem:[#allocation7 + $0xe8] sm:$0xff]
    %v2057 = vld [vmem:[#allocation7 + $0xf0] sm:$0xff]
    %v2058 = vld [vmem:[#allocation7 + $0xf8] sm:$0xff]
    %v2059 = vld [vmem:[#allocation7 + $0x100] sm:$0xff]
    %v2060 = vld [vmem:[#allocation7 + $0x108] sm:$0xff]
    %v2061 = vld [vmem:[#allocation7 + $0x110] sm:$0xff]
    %v2062 = vld [vmem:[#allocation7 + $0x118] sm:$0xff]
    %v2063 = vld [vmem:[#allocation7 + $0x120] sm:$0xff]
    %v2064 = vld [vmem:[#allocation7 + $0x128] sm:$0xff]
    %v2065 = vld [vmem:[#allocation7 + $0x130] sm:$0xff]
    %v2066 = vld [vmem:[#allocation7 + $0x138] sm:$0xff]
    %v2067 = vld [vmem:[#allocation7 + $0x140] sm:$0xff]
    %v2068 = vld [vmem:[#allocation7 + $0x148] sm:$0xff]
    %v2069 = vld [vmem:[#allocation7 + $0x150] sm:$0xff]
    %v2070 = vld [vmem:[#allocation7 + $0x158] sm:$0xff]
    %v2071 = vld [vmem:[#allocation7 + $0x160] sm:$0xff]
    %v2072 = vld [vmem:[#allocation7 + $0x168] sm:$0xff]
    %v2073 = vld [vmem:[#allocation7 + $0x170] sm:$0xff]
    %v2074 = vld [vmem:[#allocation7 + $0x178] sm:$0xff]
    %v2075 = vld [vmem:[#allocation7 + $0x180] sm:$0xff]
    %v2076 = vld [vmem:[#allocation7 + $0x188] sm:$0xff]
    %v2077 = vld [vmem:[#allocation7 + $0x190] sm:$0xff]
    %v2078 = vld [vmem:[#allocation7 + $0x198] sm:$0xff]
    %v2079 = vld [vmem:[#allocation7 + $0x1a0] sm:$0xff]
    %v2080 = vld [vmem:[#allocation7 + $0x1a8] sm:$0xff]
    %v2081 = vld [vmem:[#allocation7 + $0x1b0] sm:$0xff]
    %v2082 = vld [vmem:[#allocation7 + $0x1b8] sm:$0xff]
    %v2083 = vld [vmem:[#allocation7 + $0x1c0] sm:$0xff]
    %v2084 = vld [vmem:[#allocation7 + $0x1c8] sm:$0xff]
    %v2085 = vld [vmem:[#allocation7 + $0x1d0] sm:$0xff]
    %v2086 = vld [vmem:[#allocation7 + $0x1d8] sm:$0xff]
    %v2087 = vld [vmem:[#allocation7 + $0x1e0] sm:$0xff]
    %v2088 = vld [vmem:[#allocation7 + $0x1e8] sm:$0xff]
    %v2089 = vld [vmem:[#allocation7 + $0x1f0] sm:$0xff]
    %v2090 = vld [vmem:[#allocation7 + $0x1f8] sm:$0xff]
    %v2091 = vld [vmem:[%s6] sm:$0x3]
    %v2093 = vlaneseq
    %v2094 = vshrl.u32 %v2093, 7
    %v2095 = vsub.s32 0, %v2094
    %v2096 = vrot.slane %v2091, %v2095
    %v2097 = vlaneseq
    %v2098 = vshrl.u32 %v2097, 7
    %v2099 = vsub.s32 1, %v2098
    %v2100 = vrot.slane %v2091, %v2099
    %v2167 = vunpack.c.l.b16 %v2027
    %v2168 = vunpack.c.h.b16 %v2027
    %v2169 = vunpack.c.l.b16 %v2028
    %v2170 = vunpack.c.h.b16 %v2028
    %v2171 = vunpack.c.l.b16 %v2029
    %v2172 = vunpack.c.h.b16 %v2029
    %v2173 = vunpack.c.l.b16 %v2030
    %v2174 = vunpack.c.h.b16 %v2030
    %v2175 = vunpack.c.l.b16 %v2031
    %v2176 = vunpack.c.h.b16 %v2031
    %v2177 = vunpack.c.l.b16 %v2032
    %v2178 = vunpack.c.h.b16 %v2032
    %v2179 = vunpack.c.l.b16 %v2033
    %v2180 = vunpack.c.h.b16 %v2033
    %v2181 = vunpack.c.l.b16 %v2034
    %v2182 = vunpack.c.h.b16 %v2034
    %v2183 = vunpack.c.l.b16 %v2035
    %v2184 = vunpack.c.h.b16 %v2035
    %v2185 = vunpack.c.l.b16 %v2036
    %v2186 = vunpack.c.h.b16 %v2036
    %v2187 = vunpack.c.l.b16 %v2037
    %v2188 = vunpack.c.h.b16 %v2037
    %v2189 = vunpack.c.l.b16 %v2038
    %v2190 = vunpack.c.h.b16 %v2038
    %v2191 = vunpack.c.l.b16 %v2039
    %v2192 = vunpack.c.h.b16 %v2039
    %v2193 = vunpack.c.l.b16 %v2040
    %v2194 = vunpack.c.h.b16 %v2040
    %v2195 = vunpack.c.l.b16 %v2041
    %v2196 = vunpack.c.h.b16 %v2041
    %v2197 = vunpack.c.l.b16 %v2042
    %v2198 = vunpack.c.h.b16 %v2042
    %v2199 = vunpack.c.l.b16 %v2043
    %v2200 = vunpack.c.h.b16 %v2043
    %v2201 = vunpack.c.l.b16 %v2044
    %v2202 = vunpack.c.h.b16 %v2044
    %v2203 = vunpack.c.l.b16 %v2045
    %v2204 = vunpack.c.h.b16 %v2045
    %v2205 = vunpack.c.l.b16 %v2046
    %v2206 = vunpack.c.h.b16 %v2046
    %v2207 = vunpack.c.l.b16 %v2047
    %v2208 = vunpack.c.h.b16 %v2047
    %v2209 = vunpack.c.l.b16 %v2048
    %v2210 = vunpack.c.h.b16 %v2048
    %v2211 = vunpack.c.l.b16 %v2049
    %v2212 = vunpack.c.h.b16 %v2049
    %v2213 = vunpack.c.l.b16 %v2050
    %v2214 = vunpack.c.h.b16 %v2050
    %v2215 = vunpack.c.l.b16 %v2051
    %v2216 = vunpack.c.h.b16 %v2051
    %v2217 = vunpack.c.l.b16 %v2052
    %v2218 = vunpack.c.h.b16 %v2052
    %v2219 = vunpack.c.l.b16 %v2053
    %v2220 = vunpack.c.h.b16 %v2053
    %v2221 = vunpack.c.l.b16 %v2054
    %v2222 = vunpack.c.h.b16 %v2054
    %v2223 = vunpack.c.l.b16 %v2055
    %v2224 = vunpack.c.h.b16 %v2055
    %v2225 = vunpack.c.l.b16 %v2056
    %v2226 = vunpack.c.h.b16 %v2056
    %v2227 = vunpack.c.l.b16 %v2057
    %v2228 = vunpack.c.h.b16 %v2057
    %v2229 = vunpack.c.l.b16 %v2058
    %v2230 = vunpack.c.h.b16 %v2058
    %v2231 = vunpack.c.l.b16 %v2059
    %v2232 = vunpack.c.h.b16 %v2059
    %v2233 = vunpack.c.l.b16 %v2060
    %v2234 = vunpack.c.h.b16 %v2060
    %v2235 = vunpack.c.l.b16 %v2061
    %v2236 = vunpack.c.h.b16 %v2061
    %v2237 = vunpack.c.l.b16 %v2062
    %v2238 = vunpack.c.h.b16 %v2062
    %v2239 = vunpack.c.l.b16 %v2063
    %v2240 = vunpack.c.h.b16 %v2063
    %v2241 = vunpack.c.l.b16 %v2064
    %v2242 = vunpack.c.h.b16 %v2064
    %v2243 = vunpack.c.l.b16 %v2065
    %v2244 = vunpack.c.h.b16 %v2065
    %v2245 = vunpack.c.l.b16 %v2066
    %v2246 = vunpack.c.h.b16 %v2066
    %v2247 = vunpack.c.l.b16 %v2067
    %v2248 = vunpack.c.h.b16 %v2067
    %v2249 = vunpack.c.l.b16 %v2068
    %v2250 = vunpack.c.h.b16 %v2068
    %v2251 = vunpack.c.l.b16 %v2069
    %v2252 = vunpack.c.h.b16 %v2069
    %v2253 = vunpack.c.l.b16 %v2070
    %v2254 = vunpack.c.h.b16 %v2070
    %v2255 = vunpack.c.l.b16 %v2071
    %v2256 = vunpack.c.h.b16 %v2071
    %v2257 = vunpack.c.l.b16 %v2072
    %v2258 = vunpack.c.h.b16 %v2072
    %v2259 = vunpack.c.l.b16 %v2073
    %v2260 = vunpack.c.h.b16 %v2073
    %v2261 = vunpack.c.l.b16 %v2074
    %v2262 = vunpack.c.h.b16 %v2074
    %v2263 = vunpack.c.l.b16 %v2075
    %v2264 = vunpack.c.h.b16 %v2075
    %v2265 = vunpack.c.l.b16 %v2076
    %v2266 = vunpack.c.h.b16 %v2076
    %v2267 = vunpack.c.l.b16 %v2077
    %v2268 = vunpack.c.h.b16 %v2077
    %v2269 = vunpack.c.l.b16 %v2078
    %v2270 = vunpack.c.h.b16 %v2078
    %v2271 = vunpack.c.l.b16 %v2079
    %v2272 = vunpack.c.h.b16 %v2079
    %v2273 = vunpack.c.l.b16 %v2080
    %v2274 = vunpack.c.h.b16 %v2080
    %v2275 = vunpack.c.l.b16 %v2081
    %v2276 = vunpack.c.h.b16 %v2081
    %v2277 = vunpack.c.l.b16 %v2082
    %v2278 = vunpack.c.h.b16 %v2082
    %v2279 = vunpack.c.l.b16 %v2083
    %v2280 = vunpack.c.h.b16 %v2083
    %v2281 = vunpack.c.l.b16 %v2084
    %v2282 = vunpack.c.h.b16 %v2084
    %v2283 = vunpack.c.l.b16 %v2085
    %v2284 = vunpack.c.h.b16 %v2085
    %v2285 = vunpack.c.l.b16 %v2086
    %v2286 = vunpack.c.h.b16 %v2086
    %v2287 = vunpack.c.l.b16 %v2087
    %v2288 = vunpack.c.h.b16 %v2087
    %v2289 = vunpack.c.l.b16 %v2088
    %v2290 = vunpack.c.h.b16 %v2088
    %v2291 = vunpack.c.l.b16 %v2089
    %v2292 = vunpack.c.h.b16 %v2089
    %v2293 = vunpack.c.l.b16 %v2090
    %v2294 = vunpack.c.h.b16 %v2090
    %v2295 = vpack.c.b16 %v2169, %v2167
    %v2296 = vpack.c.b16 %v2170, %v2168
    %v2297 = vpack.c.b16 %v2173, %v2171
    %v2298 = vpack.c.b16 %v2174, %v2172
    %v2299 = vpack.c.b16 %v2177, %v2175
    %v2300 = vpack.c.b16 %v2178, %v2176
    %v2301 = vpack.c.b16 %v2181, %v2179
    %v2302 = vpack.c.b16 %v2182, %v2180
    %v2303 = vpack.c.b16 %v2185, %v2183
    %v2304 = vpack.c.b16 %v2186, %v2184
    %v2305 = vpack.c.b16 %v2189, %v2187
    %v2306 = vpack.c.b16 %v2190, %v2188
    %v2307 = vpack.c.b16 %v2193, %v2191
    %v2308 = vpack.c.b16 %v2194, %v2192
    %v2309 = vpack.c.b16 %v2197, %v2195
    %v2310 = vpack.c.b16 %v2198, %v2196
    %v2311 = vpack.c.b16 %v2201, %v2199
    %v2312 = vpack.c.b16 %v2202, %v2200
    %v2313 = vpack.c.b16 %v2205, %v2203
    %v2314 = vpack.c.b16 %v2206, %v2204
    %v2315 = vpack.c.b16 %v2209, %v2207
    %v2316 = vpack.c.b16 %v2210, %v2208
    %v2317 = vpack.c.b16 %v2213, %v2211
    %v2318 = vpack.c.b16 %v2214, %v2212
    %v2319 = vpack.c.b16 %v2217, %v2215
    %v2320 = vpack.c.b16 %v2218, %v2216
    %v2321 = vpack.c.b16 %v2221, %v2219
    %v2322 = vpack.c.b16 %v2222, %v2220
    %v2323 = vpack.c.b16 %v2225, %v2223
    %v2324 = vpack.c.b16 %v2226, %v2224
    %v2325 = vpack.c.b16 %v2229, %v2227
    %v2326 = vpack.c.b16 %v2230, %v2228
    %v2327 = vpack.c.b16 %v2233, %v2231
    %v2328 = vpack.c.b16 %v2234, %v2232
    %v2329 = vpack.c.b16 %v2237, %v2235
    %v2330 = vpack.c.b16 %v2238, %v2236
    %v2331 = vpack.c.b16 %v2241, %v2239
    %v2332 = vpack.c.b16 %v2242, %v2240
    %v2333 = vpack.c.b16 %v2245, %v2243
    %v2334 = vpack.c.b16 %v2246, %v2244
    %v2335 = vpack.c.b16 %v2249, %v2247
    %v2336 = vpack.c.b16 %v2250, %v2248
    %v2337 = vpack.c.b16 %v2253, %v2251
    %v2338 = vpack.c.b16 %v2254, %v2252
    %v2339 = vpack.c.b16 %v2257, %v2255
    %v2340 = vpack.c.b16 %v2258, %v2256
    %v2341 = vpack.c.b16 %v2261, %v2259
    %v2342 = vpack.c.b16 %v2262, %v2260
    %v2343 = vpack.c.b16 %v2265, %v2263
    %v2344 = vpack.c.b16 %v2266, %v2264
    %v2345 = vpack.c.b16 %v2269, %v2267
    %v2346 = vpack.c.b16 %v2270, %v2268
    %v2347 = vpack.c.b16 %v2273, %v2271
    %v2348 = vpack.c.b16 %v2274, %v2272
    %v2349 = vpack.c.b16 %v2277, %v2275
    %v2350 = vpack.c.b16 %v2278, %v2276
    %v2351 = vpack.c.b16 %v2281, %v2279
    %v2352 = vpack.c.b16 %v2282, %v2280
    %v2353 = vpack.c.b16 %v2285, %v2283
    %v2354 = vpack.c.b16 %v2286, %v2284
    %v2355 = vpack.c.b16 %v2289, %v2287
    %v2356 = vpack.c.b16 %v2290, %v2288
    %v2357 = vpack.c.b16 %v2293, %v2291
    %v2358 = vpack.c.b16 %v2294, %v2292
    %2423 = vmatprep.subr.bf16.mxu0 %v2296
    %2424 = vmatpush1.bf16.msra.mxu0 %v2295
    %2425 = vmatprep.subr.bf16.mxu0 %v2298
    %2426 = vmatpush1.bf16.msra.mxu0 %v2297
    %2427 = vmatprep.subr.bf16.mxu0 %v2300
    %2428 = vmatpush1.bf16.msra.mxu0 %v2299
    %2429 = vmatprep.subr.bf16.mxu0 %v2302
    %2430 = vmatpush1.bf16.msra.mxu0 %v2301
    %2431 = vmatprep.subr.bf16.mxu0 %v2304
    %2432 = vmatpush1.bf16.msra.mxu0 %v2303
    %2433 = vmatprep.subr.bf16.mxu0 %v2306
    %2434 = vmatpush1.bf16.msra.mxu0 %v2305
    %2435 = vmatprep.subr.bf16.mxu0 %v2308
    %2436 = vmatpush1.bf16.msra.mxu0 %v2307
    %2437 = vmatprep.subr.bf16.mxu0 %v2310
    %2438 = vmatpush1.bf16.msra.mxu0 %v2309
    %2439 = vmatprep.subr.bf16.mxu0 %v2312
    %2440 = vmatpush1.bf16.msra.mxu0 %v2311
    %2441 = vmatprep.subr.bf16.mxu0 %v2314
    %2442 = vmatpush1.bf16.msra.mxu0 %v2313
    %2443 = vmatprep.subr.bf16.mxu0 %v2316
    %2444 = vmatpush1.bf16.msra.mxu0 %v2315
    %2445 = vmatprep.subr.bf16.mxu0 %v2318
    %2446 = vmatpush1.bf16.msra.mxu0 %v2317
    %2447 = vmatprep.subr.bf16.mxu0 %v2320
    %2448 = vmatpush1.bf16.msra.mxu0 %v2319
    %2449 = vmatprep.subr.bf16.mxu0 %v2322
    %2450 = vmatpush1.bf16.msra.mxu0 %v2321
    %2451 = vmatprep.subr.bf16.mxu0 %v2324
    %2452 = vmatpush1.bf16.msra.mxu0 %v2323
    %2453 = vmatprep.subr.bf16.mxu0 %v2326
    %2454 = vmatpush1.bf16.msra.mxu0 %v2325
    %2455 = vmatprep.mubr.bf16.mxu0 %v2024
    %2456 = vmatmul.mubr.bf16.gmra.mrb[0].mxu0 %v2023
    %v2457 = vpop.f32.mrb[0].mxu0
    %v2458 = vadd.f32 %v2096, %v2457
    %v2459 = vpop.f32.mrb[0].mxu0
    %v2460 = vadd.f32 %v2100, %v2459
    %v2461 = vpop.f32.mrb[0].mxu0
    %v2462 = vpop.f32.mrb[0].mxu0
    %2463 = vdwg.mxu0
    %2464 = vmatprep.subr.bf16.mxu0 %v2328
    %2465 = vmatpush1.bf16.msra.mxu0 %v2327
    %2466 = vmatprep.subr.bf16.mxu0 %v2330
    %2467 = vmatpush1.bf16.msra.mxu0 %v2329
    %2468 = vmatprep.subr.bf16.mxu0 %v2332
    %2469 = vmatpush1.bf16.msra.mxu0 %v2331
    %2470 = vmatprep.subr.bf16.mxu0 %v2334
    %2471 = vmatpush1.bf16.msra.mxu0 %v2333
    %2472 = vmatprep.subr.bf16.mxu0 %v2336
    %2473 = vmatpush1.bf16.msra.mxu0 %v2335
    %2474 = vmatprep.subr.bf16.mxu0 %v2338
    %2475 = vmatpush1.bf16.msra.mxu0 %v2337
    %2476 = vmatprep.subr.bf16.mxu0 %v2340
    %2477 = vmatpush1.bf16.msra.mxu0 %v2339
    %2478 = vmatprep.subr.bf16.mxu0 %v2342
    %2479 = vmatpush1.bf16.msra.mxu0 %v2341
    %2480 = vmatprep.subr.bf16.mxu0 %v2344
    %2481 = vmatpush1.bf16.msra.mxu0 %v2343
    %2482 = vmatprep.subr.bf16.mxu0 %v2346
    %2483 = vmatpush1.bf16.msra.mxu0 %v2345
    %2484 = vmatprep.subr.bf16.mxu0 %v2348
    %2485 = vmatpush1.bf16.msra.mxu0 %v2347
    %2486 = vmatprep.subr.bf16.mxu0 %v2350
    %2487 = vmatpush1.bf16.msra.mxu0 %v2349
    %2488 = vmatprep.subr.bf16.mxu0 %v2352
    %2489 = vmatpush1.bf16.msra.mxu0 %v2351
    %2490 = vmatprep.subr.bf16.mxu0 %v2354
    %2491 = vmatpush1.bf16.msra.mxu0 %v2353
    %2492 = vmatprep.subr.bf16.mxu0 %v2356
    %2493 = vmatpush1.bf16.msra.mxu0 %v2355
    %2494 = vmatprep.subr.bf16.mxu0 %v2358
    %2495 = vmatpush1.bf16.msra.mxu0 %v2357
    %2496 = vmatprep.mubr.bf16.mxu0 %v2026
    %2497 = vmatmul.mubr.bf16.gmra.mrb[0].mxu0 %v2025
    %v2498 = vpop.f32.mrb[0].mxu0
    %v2499 = vadd.f32 %v2458, %v2498
    %v2500 = vpop.f32.mrb[0].mxu0
    %v2501 = vadd.f32 %v2460, %v2500
    %v2502 = vpop.f32.mrb[0].mxu0
    %v2503 = vpop.f32.mrb[0].mxu0
    %2504 = vdwg.mxu0
    %vm2505 = vcmp.gt.f32.partialorder %v2499, 0.0
    %vm2506 = vcmp.gt.f32.partialorder %v2501, 0.0
    %v2507 = vmul.f32 %v2499, 0.2
    %v2508 = vmul.f32 %v2501, 0.2
    %v2509 = vsel %vm2505, %v2499, %v2507
    %v2510 = vsel %vm2506, %v2501, %v2508
    %v2511 = vld [vmem:[%s7] sm:$0x3]
    %v2513 = vlaneseq
    %v2514 = vshrl.u32 %v2513, 7
    %v2515 = vsub.s32 0, %v2514
    %v2516 = vrot.slane %v2511, %v2515
    %v2517 = vlaneseq
    %v2518 = vshrl.u32 %v2517, 7
    %v2519 = vsub.s32 1, %v2518
    %v2520 = vrot.slane %v2511, %v2519
    %v2523 = vmul.f32 %v2509, %v2516
    %v2524 = vmul.f32 %v2510, %v2520
    %v2525 = vadd.f32 %v2523, %v2524
    %2526 = vadd.xlane.f32.xlu0 %v2525
    %v2527 = vpop.xlane.xlu0 %2526
    %v2528 = vld [vmem:[#allocation2] sm:$0x1]
    %v2530 = vlaneseq
    %v2531 = vshrl.u32 %v2530, 7
    %v2532 = vsub.s32 0, %v2531
    %v2533 = vrot.slane %v2528, %v2532
    %v2535 = vadd.f32 %v2527, %v2533
    %v2536 = vxor.u32 %v2535, 2147483648
    %v2537 = vmul.f32 %v2536, 1.442695
    %v2538 = vpow.pop %v2537
    %v2539 = vadd.f32 %v2538, 1.0
    %v2540 = vrcp.pop %v2539
    %v2541 = vmul.f32 1.0, %v2540
    %vm2542 = vcmask 7168
    %2543 = vst.msk [vmem:[%s9] sm:$0xff] %vm2542, %v2541
    // Predicated region
    $region50: #{tpu_custom_call.1} parent=1 // pred_check
      _
    $region51: #{tpu_custom_call.1} parent=1 // pred_check_branch
      %2545 = sbr.rel (0) target = $region53
    $region52: #{tpu_custom_call.1} parent=1 // pred_region
      _
    $region53: #{tpu_custom_call.1} parent=1 // pred_fallthru
      _
    // Predicated region
    $region54: #{tpu_custom_call.1} parent=1 // pred_check
      _
    $region55: #{tpu_custom_call.1} parent=1 // pred_check_branch
      %2547 = sbr.rel (0) target = $region57
    $region56: #{tpu_custom_call.1} parent=1 // pred_region
      _
    $region57: #{tpu_custom_call.1} parent=1 // pred_fallthru
      _
    %2548 = vsyncpa [#allocation4], 1
    %2549 = vsyncpa [#allocation6], 1

</llo_original>
